<compile_context>
chip_gen: v6e
topology: v6e:2x2x1
jax: 0.10.0
libtpu: 0.0.40
codegen_flags: <defaults>
</compile_context>

<pallas_src>
import numpy as np
import jax
import jax.numpy as jnp
from jax import lax
from jax.experimental import pallas as pl
from jax.experimental.pallas import tpu as pltpu


# ----------------------------- fused Pallas kernel ---------------------------

def _cnn_fused_kernel(x_ref, w1_ref, b1_ref, w2_ref, b2_ref,
                      wfc_ref, bfc_ref, wout_ref, bout_ref, o_ref):
    """Entire CNN forward on VMEM-resident tensors.

    x_ref   : (N, 256)      f32  flattened NCHW input
    w1_ref  : (256, 4*256)  bf16 conv1(+pool) parity classes, column-concatenated
    b1_ref  : (1, 256)      f32  (padding lanes = 0)
    w2_ref  : (256, 4*128)  bf16 conv2(+pool) parity classes, column-concatenated
    b2_ref  : (1, 128)      f32  (padding lanes = 0)
    wfc_ref : (128, 128)    bf16 pre-transposed, zero-padded fc weight
    bfc_ref : (1, 128)      f32  (padding lanes = 0)
    wout_ref: (128, 128)    bf16 pre-transposed, zero-padded output weight
    bout_ref: (1, 128)      f32  (padding lanes = -1e30)
    o_ref   : (N, 128)      f32  log-softmax output (first Dout lanes valid)
    """

    def conv_pool_relu(inp_bf16, w_ref, b_ref):
        # conv(k=3,s=1) + maxpool(2,2) + relu as ONE wide bf16 matmul followed
        # by a max over the 4 lane-aligned pool-parity column slabs.
        t = jnp.dot(inp_bf16, w_ref[...], preferred_element_type=jnp.float32)
        p = w_ref.shape[1] // 4
        y = jnp.maximum(jnp.maximum(t[:, 0 * p:1 * p], t[:, 1 * p:2 * p]),
                        jnp.maximum(t[:, 2 * p:3 * p], t[:, 3 * p:4 * p]))
        return jnp.maximum(y + b_ref[...], 0.0)

    x = x_ref[...].astype(jnp.bfloat16)               # (N, 256)
    p1 = conv_pool_relu(x, w1_ref, b1_ref)            # (N, 256): 196 real + 0-pad
    p2 = conv_pool_relu(p1.astype(jnp.bfloat16),
                        w2_ref, b2_ref)               # (N, 128): 32 real (torch flatten order)

    h = jnp.dot(p2.astype(jnp.bfloat16), wfc_ref[...],
                preferred_element_type=jnp.float32) + bfc_ref[...]
    h = jnp.maximum(h, 0.0)                           # fc + relu, (N, 128)

    logits = jnp.dot(h.astype(jnp.bfloat16), wout_ref[...],
                     preferred_element_type=jnp.float32) + bout_ref[...]
    m = jnp.max(logits, axis=-1, keepdims=True)       # padded lanes = -1e30, never win
    z = logits - m
    o_ref[...] = z - jnp.log(jnp.sum(jnp.exp(z), axis=-1, keepdims=True))


def _full_spec(shape):
    nd = len(shape)
    return pl.BlockSpec(shape, lambda *_, _nd=nd: (0,) * _nd)


def cnn_forward(x_nchw, packed):
    """Single fused pallas_call for the whole forward pass."""
    N = x_nchw.shape[0]
    x_flat = x_nchw.reshape(N, -1)                    # NCHW flatten of the input (cheap)
    args = (x_flat,
            packed["w1c"], packed["b1c"],
            packed["w2c"], packed["b2c"],
            packed["wfc"], packed["bfc"],
            packed["wout"], packed["bout"])
    PD = packed["wout"].shape[1]                      # 128 (lane-dense output)
    out_padded = pl.pallas_call(
        _cnn_fused_kernel,
        out_shape=jax.ShapeDtypeStruct((N, PD), jnp.float32),
        grid=(1,),
        in_specs=[_full_spec(a.shape) for a in args],
        out_specs=_full_spec((N, PD)),
        compiler_params=pltpu.CompilerParams(dimension_semantics=("arbitrary",)),
    )(*args)
    return out_padded[:, :packed["dout"]]


# ------------------------ one-time weight packing (init) ---------------------

def _round_up(x, m):
    return ((x + m - 1) // m) * m


def _pack_conv_pool(w, Hin, Win, rows_total, cols_pad):
    """Unroll conv(k=3,s=1)+maxpool(2,2,floor) into 4 parity-class matrices,
    each zero-padded to `cols_pad` columns, concatenated along the column axis.

    w: (Cout, Cin, 3, 3) numpy.  Input flattened in (Cin, Hin, Win) row-major
    order (row index of the returned matrix); rows beyond Cin*Hin*Win stay 0.
    Output columns within each parity slab are in (cout, i, j) order (= torch
    NCHW flatten of the pooled map), padded with zeros up to cols_pad.
    Returns (rows_total, 4*cols_pad) float32.
    """
    Cout, Cin, K, _ = w.shape
    Hp, Wp = (Hin - K + 1) // 2, (Win - K + 1) // 2
    assert Cout * Hp * Wp <= cols_pad
    assert Cin * Hin * Win <= rows_total
    out = np.zeros((rows_total, 4 * cols_pad), dtype=np.float32)
    for a in range(2):
        for b in range(2):
            base = (a * 2 + b) * cols_pad
            for co in range(Cout):
                for i in range(Hp):
                    for j in range(Wp):
                        q = base + co * (Hp * Wp) + i * Wp + j
                        for ci in range(Cin):
                            for ki in range(K):
                                for kj in range(K):
                                    p = (ci * (Hin * Win)
                                         + (2 * i + a + ki) * Win
                                         + (2 * j + b + kj))
                                    out[p, q] = w[co, ci, ki, kj]
    return out


def _pad_bias_repeat(b, reps, pad_to, pad_value=0.0):
    v = np.full((pad_to,), pad_value, np.float32)
    b = np.asarray(b, np.float32)
    v[: b.shape[0] * reps] = np.repeat(b, reps)
    return v[None, :]


def prepare_packed_params(raw, Hin=16, Win=16):
    """Runs once: all reshapes / unrolls / padding / bf16 casts hoisted out of
    the forward pass.  Padding lanes carry zero weight + zero bias so they stay
    exactly 0 through relu and never leak into the next layer."""
    w1 = np.asarray(raw["w1"], np.float32)
    w2 = np.asarray(raw["w2"], np.float32)
    Cin = w1.shape[1]
    C1, C2 = w1.shape[0], w2.shape[0]
    H1p, W1p = (Hin - 2) // 2, (Win - 2) // 2          # 7, 7
    H2p, W2p = (H1p - 2) // 2, (W1p - 2) // 2          # 2, 2

    P1 = _round_up(C1 * H1p * W1p, 128)                # 196 -> 256
    P2 = _round_up(C2 * H2p * W2p, 128)                # 32  -> 128
    Hhid = np.asarray(raw["wfc"]).shape[0]
    PH = _round_up(Hhid, 128)                          # 32  -> 128
    Dout = np.asarray(raw["wout"]).shape[0]
    PD = _round_up(Dout, 128)                          # 10  -> 128

    w1cat = _pack_conv_pool(w1, Hin, Win, rows_total=Cin * Hin * Win, cols_pad=P1)
    w2cat = _pack_conv_pool(w2, H1p, W1p, rows_total=P1, cols_pad=P2)

    wfc = np.zeros((P2, PH), np.float32)
    wfc[: C2 * H2p * W2p, :Hhid] = np.asarray(raw["wfc"], np.float32).T
    bfc = np.zeros((1, PH), np.float32)
    bfc[0, :Hhid] = np.asarray(raw["bfc"], np.float32)

    wout = np.zeros((PH, PD), np.float32)
    wout[:Hhid, :Dout] = np.asarray(raw["wout"], np.float32).T
    bout = np.full((1, PD), -1e30, np.float32)         # padded logits vanish in log-softmax
    bout[0, :Dout] = np.asarray(raw["bout"], np.float32)

    return {
        "w1c": jnp.asarray(w1cat, jnp.bfloat16),
        "b1c": jnp.asarray(_pad_bias_repeat(raw["b1"], H1p * W1p, P1)),
        "w2c": jnp.asarray(w2cat, jnp.bfloat16),
        "b2c": jnp.asarray(_pad_bias_repeat(raw["b2"], H2p * W2p, P2)),
        "wfc": jnp.asarray(wfc, jnp.bfloat16),
        "bfc": jnp.asarray(bfc),
        "wout": jnp.asarray(wout, jnp.bfloat16),
        "bout": jnp.asarray(bout),
        "dout": Dout,
    }


def init_raw_params(key, C1, C2, H, Dout, flat_dim):
    """PyTorch-shaped raw parameters (uniform +-1/sqrt(fan_in))."""
    def unif(k, shape, fan_in):
        bound = 1.0 / np.sqrt(float(fan_in))
        return jax.random.uniform(k, shape, jnp.float32, -bound, bound)

    ks = jax.random.split(key, 8)
    return {
        "w1": unif(ks[0], (C1, 1, 3, 3), 1 * 9),
        "b1": unif(ks[1], (C1,), 1 * 9),
        "w2": unif(ks[2], (C2, C1, 3, 3), C1 * 9),
        "b2": unif(ks[3], (C2,), C1 * 9),
        "wfc": unif(ks[4], (H, flat_dim), flat_dim),
        "bfc": unif(ks[5], (H,), flat_dim),
        "wout": unif(ks[6], (Dout, H), H),
        "bout": unif(ks[7], (Dout,), H),
    }


# ----------------------------- pure-JAX reference ----------------------------

def reference_forward(x_nchw, raw):
    dn = ("NCHW", "OIHW", "NCHW")
    y = lax.conv_general_dilated(x_nchw, raw["w1"], (1, 1), "VALID",
                                 dimension_numbers=dn) + raw["b1"][None, :, None, None]
    y = lax.reduce_window(y, -jnp.inf, lax.max, (1, 1, 2, 2), (1, 1, 2, 2), "VALID")
    y = jnp.maximum(y, 0.0)
    y = lax.conv_general_dilated(y, raw["w2"], (1, 1), "VALID",
                                 dimension_numbers=dn) + raw["b2"][None, :, None, None]
    y = lax.reduce_window(y, -jnp.inf, lax.max, (1, 1, 2, 2), (1, 1, 2, 2), "VALID")
    y = jnp.maximum(y, 0.0)
    flat = y.reshape(y.shape[0], -1)
    h = jnp.maximum(flat @ raw["wfc"].T + raw["bfc"], 0.0)
    logits = h @ raw["wout"].T + raw["bout"]
    return jax.nn.log_softmax(logits, axis=-1)


# ----------------------------------- main ------------------------------------

if __name__ == "__main__":
    # Shapes consistent with the module: in_shape=(1,16,16), C1=4, C2=8, H=32,
    # Dout=10, batch=2.  Trace: 16 -conv3-> 14 -pool-> 7 -conv3-> 5 -pool-> 2.
    N, Cin, Hin, Win = 2, 1, 16, 16
    C1, C2, Hhid, Dout = 4, 8, 32, 10
    flat_dim = C2 * 2 * 2

    key = jax.random.PRNGKey(0)
    kx, kp = jax.random.split(key)
    x = jax.random.normal(kx, (N, Cin, Hin, Win), dtype=jnp.float32)

    raw = init_raw_params(kp, C1, C2, Hhid, Dout, flat_dim)
    packed = prepare_packed_params(raw, Hin, Win)   # one-time weight packing (bf16)

    out = jax.block_until_ready(cnn_forward(x, packed))
    assert out.shape == (N, Dout), out.shape

    # Correctness vs. a pure-JAX f32 reference of the PyTorch module.
    # Tolerance relaxed vs the all-f32 version because weights/activations feed
    # the MXU in bf16 (f32 accumulation).
    ref = jax.block_until_ready(reference_forward(x, raw))
    assert np.allclose(np.asarray(out), np.asarray(ref), atol=5e-2, rtol=5e-2), (out, ref)
    # log-softmax rows should exponentiate-sum to 1 (computed in f32 in-kernel)
    assert np.allclose(np.exp(np.asarray(out)).sum(axis=-1), 1.0, atol=1e-4)

    print("KERNEL_OK")
</pallas_src>

<mosaic_0001>
module attributes {stable_mosaic.version = 11 : i64} {
  func.func @_cnn_fused_kernel(%arg0: i32, %arg1: memref<2x256xf32, #tpu.memory_space<vmem>>, %arg2: memref<256x1024xbf16, #tpu.memory_space<vmem>>, %arg3: memref<1x256xf32, #tpu.memory_space<vmem>>, %arg4: memref<256x512xbf16, #tpu.memory_space<vmem>>, %arg5: memref<1x128xf32, #tpu.memory_space<vmem>>, %arg6: memref<128x128xbf16, #tpu.memory_space<vmem>>, %arg7: memref<1x128xf32, #tpu.memory_space<vmem>>, %arg8: memref<128x128xbf16, #tpu.memory_space<vmem>>, %arg9: memref<1x128xf32, #tpu.memory_space<vmem>>, %arg10: memref<2x128xf32, #tpu.memory_space<vmem>>) attributes {dimension_semantics = [#tpu.dimension_semantics<arbitrary>], iteration_bounds = array<i64: 1>, scalar_prefetch = 0 : i64, scratch_operands = 0 : i64, tpu.core_type = #tpu.core_type<tc>, window_params = [{pipeline_mode = #tpu.pipeline_mode<synchronous>, transform_indices = @transform_0, window_bounds = array<i64: 2, 256>}, {pipeline_mode = #tpu.pipeline_mode<synchronous>, transform_indices = @transform_1, window_bounds = array<i64: 256, 1024>}, {pipeline_mode = #tpu.pipeline_mode<synchronous>, transform_indices = @transform_2, window_bounds = array<i64: 1, 256>}, {pipeline_mode = #tpu.pipeline_mode<synchronous>, transform_indices = @transform_3, window_bounds = array<i64: 256, 512>}, {pipeline_mode = #tpu.pipeline_mode<synchronous>, transform_indices = @transform_4, window_bounds = array<i64: 1, 128>}, {pipeline_mode = #tpu.pipeline_mode<synchronous>, transform_indices = @transform_5, window_bounds = array<i64: 128, 128>}, {pipeline_mode = #tpu.pipeline_mode<synchronous>, transform_indices = @transform_6, window_bounds = array<i64: 1, 128>}, {pipeline_mode = #tpu.pipeline_mode<synchronous>, transform_indices = @transform_7, window_bounds = array<i64: 128, 128>}, {pipeline_mode = #tpu.pipeline_mode<synchronous>, transform_indices = @transform_8, window_bounds = array<i64: 1, 128>}, {pipeline_mode = #tpu.pipeline_mode<synchronous>, transform_indices = @transform_9, window_bounds = array<i64: 2, 128>}]} {
    %c0 = arith.constant 0 : index
    %c0_0 = arith.constant 0 : index
    %0 = vector.load %arg1[%c0, %c0_0] : memref<2x256xf32, #tpu.memory_space<vmem>>, vector<2x256xf32>
    %1 = arith.truncf %0 : vector<2x256xf32> to vector<2x256xbf16>
    %c0_1 = arith.constant 0 : index
    %c0_2 = arith.constant 0 : index
    %2 = vector.load %arg2[%c0_1, %c0_2] : memref<256x1024xbf16, #tpu.memory_space<vmem>>, vector<256x1024xbf16>
    %cst = arith.constant dense<0.000000e+00> : vector<2x1024xf32>
    %3 = tpu.matmul %1, %2, %cst {dimension_numbers = #tpu.dot_dimension_numbers<[1], [0], [0], [1], [0, 0, 1, 1], [], []>} : vector<2x256xbf16>, vector<256x1024xbf16>, vector<2x1024xf32> -> vector<2x1024xf32>
    %4 = vector.extract_strided_slice %3 {offsets = [0, 0], sizes = [2, 256], strides = [1, 1]} : vector<2x1024xf32> to vector<2x256xf32>
    %5 = vector.extract_strided_slice %3 {offsets = [0, 256], sizes = [2, 256], strides = [1, 1]} : vector<2x1024xf32> to vector<2x256xf32>
    %6 = arith.maximumf %4, %5 : vector<2x256xf32>
    %7 = vector.extract_strided_slice %3 {offsets = [0, 512], sizes = [2, 256], strides = [1, 1]} : vector<2x1024xf32> to vector<2x256xf32>
    %8 = vector.extract_strided_slice %3 {offsets = [0, 768], sizes = [2, 256], strides = [1, 1]} : vector<2x1024xf32> to vector<2x256xf32>
    %9 = arith.maximumf %7, %8 : vector<2x256xf32>
    %10 = arith.maximumf %6, %9 : vector<2x256xf32>
    %c0_3 = arith.constant 0 : index
    %c0_4 = arith.constant 0 : index
    %11 = vector.load %arg3[%c0_3, %c0_4] : memref<1x256xf32, #tpu.memory_space<vmem>>, vector<1x256xf32>
    %12 = vector.broadcast %11 : vector<1x256xf32> to vector<2x256xf32>
    %13 = arith.addf %10, %12 : vector<2x256xf32>
    %cst_5 = arith.constant 0.000000e+00 : f32
    %14 = vector.broadcast %cst_5 : f32 to vector<2x256xf32>
    %15 = arith.maximumf %13, %14 : vector<2x256xf32>
    %16 = arith.truncf %15 : vector<2x256xf32> to vector<2x256xbf16>
    %c0_6 = arith.constant 0 : index
    %c0_7 = arith.constant 0 : index
    %17 = vector.load %arg4[%c0_6, %c0_7] : memref<256x512xbf16, #tpu.memory_space<vmem>>, vector<256x512xbf16>
    %cst_8 = arith.constant dense<0.000000e+00> : vector<2x512xf32>
    %18 = tpu.matmul %16, %17, %cst_8 {dimension_numbers = #tpu.dot_dimension_numbers<[1], [0], [0], [1], [0, 0, 1, 1], [], []>} : vector<2x256xbf16>, vector<256x512xbf16>, vector<2x512xf32> -> vector<2x512xf32>
    %19 = vector.extract_strided_slice %18 {offsets = [0, 0], sizes = [2, 128], strides = [1, 1]} : vector<2x512xf32> to vector<2x128xf32>
    %20 = vector.extract_strided_slice %18 {offsets = [0, 128], sizes = [2, 128], strides = [1, 1]} : vector<2x512xf32> to vector<2x128xf32>
    %21 = arith.maximumf %19, %20 : vector<2x128xf32>
    %22 = vector.extract_strided_slice %18 {offsets = [0, 256], sizes = [2, 128], strides = [1, 1]} : vector<2x512xf32> to vector<2x128xf32>
    %23 = vector.extract_strided_slice %18 {offsets = [0, 384], sizes = [2, 128], strides = [1, 1]} : vector<2x512xf32> to vector<2x128xf32>
    %24 = arith.maximumf %22, %23 : vector<2x128xf32>
    %25 = arith.maximumf %21, %24 : vector<2x128xf32>
    %c0_9 = arith.constant 0 : index
    %c0_10 = arith.constant 0 : index
    %26 = vector.load %arg5[%c0_9, %c0_10] : memref<1x128xf32, #tpu.memory_space<vmem>>, vector<1x128xf32>
    %27 = vector.broadcast %26 : vector<1x128xf32> to vector<2x128xf32>
    %28 = arith.addf %25, %27 : vector<2x128xf32>
    %cst_11 = arith.constant 0.000000e+00 : f32
    %29 = vector.broadcast %cst_11 : f32 to vector<2x128xf32>
    %30 = arith.maximumf %28, %29 : vector<2x128xf32>
    %31 = arith.truncf %30 : vector<2x128xf32> to vector<2x128xbf16>
    %c0_12 = arith.constant 0 : index
    %c0_13 = arith.constant 0 : index
    %32 = vector.load %arg6[%c0_12, %c0_13] : memref<128x128xbf16, #tpu.memory_space<vmem>>, vector<128x128xbf16>
    %cst_14 = arith.constant dense<0.000000e+00> : vector<2x128xf32>
    %33 = tpu.matmul %31, %32, %cst_14 {dimension_numbers = #tpu.dot_dimension_numbers<[1], [0], [0], [1], [0, 0, 1, 1], [], []>} : vector<2x128xbf16>, vector<128x128xbf16>, vector<2x128xf32> -> vector<2x128xf32>
    %c0_15 = arith.constant 0 : index
    %c0_16 = arith.constant 0 : index
    %34 = vector.load %arg7[%c0_15, %c0_16] : memref<1x128xf32, #tpu.memory_space<vmem>>, vector<1x128xf32>
    %35 = vector.broadcast %34 : vector<1x128xf32> to vector<2x128xf32>
    %36 = arith.addf %33, %35 : vector<2x128xf32>
    %cst_17 = arith.constant 0.000000e+00 : f32
    %37 = vector.broadcast %cst_17 : f32 to vector<2x128xf32>
    %38 = arith.maximumf %36, %37 : vector<2x128xf32>
    %39 = arith.truncf %38 : vector<2x128xf32> to vector<2x128xbf16>
    %c0_18 = arith.constant 0 : index
    %c0_19 = arith.constant 0 : index
    %40 = vector.load %arg8[%c0_18, %c0_19] : memref<128x128xbf16, #tpu.memory_space<vmem>>, vector<128x128xbf16>
    %cst_20 = arith.constant dense<0.000000e+00> : vector<2x128xf32>
    %41 = tpu.matmul %39, %40, %cst_20 {dimension_numbers = #tpu.dot_dimension_numbers<[1], [0], [0], [1], [0, 0, 1, 1], [], []>} : vector<2x128xbf16>, vector<128x128xbf16>, vector<2x128xf32> -> vector<2x128xf32>
    %c0_21 = arith.constant 0 : index
    %c0_22 = arith.constant 0 : index
    %42 = vector.load %arg9[%c0_21, %c0_22] : memref<1x128xf32, #tpu.memory_space<vmem>>, vector<1x128xf32>
    %43 = vector.broadcast %42 : vector<1x128xf32> to vector<2x128xf32>
    %44 = arith.addf %41, %43 : vector<2x128xf32>
    %cst_23 = arith.constant dense<0xFF800000> : vector<2xf32>
    %45 = vector.multi_reduction <maximumf>, %44, %cst_23 [1] : vector<2x128xf32> to vector<2xf32>
    %46 = vector.shape_cast %45 : vector<2xf32> to vector<2x1xf32>
    %47 = vector.broadcast %46 : vector<2x1xf32> to vector<2x128xf32>
    %48 = arith.subf %44, %47 : vector<2x128xf32>
    %49 = math.exp %48 : vector<2x128xf32>
    %cst_24 = arith.constant dense<0.000000e+00> : vector<2xf32>
    %50 = vector.multi_reduction <add>, %49, %cst_24 [1] : vector<2x128xf32> to vector<2xf32>
    %51 = vector.shape_cast %50 : vector<2xf32> to vector<2x1xf32>
    %52 = math.log %51 : vector<2x1xf32>
    %53 = vector.broadcast %52 : vector<2x1xf32> to vector<2x128xf32>
    %54 = arith.subf %48, %53 : vector<2x128xf32>
    %c0_25 = arith.constant 0 : index
    %c0_26 = arith.constant 0 : index
    %55 = vector.load %arg10[%c0_25, %c0_26] : memref<2x128xf32, #tpu.memory_space<vmem>>, vector<2x128xf32>
    tpu.vector_store %arg10[%c0_25, %c0_26], %54 {strides = array<i32>} : memref<2x128xf32, #tpu.memory_space<vmem>>, vector<2x128xf32>,
    return
  }
  func.func @transform_0(%arg0: i32) -> (i32, i32) {
    %c0_i32 = arith.constant 0 : i32
    %c0_i32_0 = arith.constant 0 : i32
    %c0_i32_1 = arith.constant 0 : i32
    return %c0_i32, %c0_i32_0 : i32, i32
  }
  func.func @transform_1(%arg0: i32) -> (i32, i32) {
    %c0_i32 = arith.constant 0 : i32
    %c0_i32_0 = arith.constant 0 : i32
    %c0_i32_1 = arith.constant 0 : i32
    return %c0_i32, %c0_i32_0 : i32, i32
  }
  func.func @transform_2(%arg0: i32) -> (i32, i32) {
    %c0_i32 = arith.constant 0 : i32
    %c0_i32_0 = arith.constant 0 : i32
    %c0_i32_1 = arith.constant 0 : i32
    return %c0_i32, %c0_i32_0 : i32, i32
  }
  func.func @transform_3(%arg0: i32) -> (i32, i32) {
    %c0_i32 = arith.constant 0 : i32
    %c0_i32_0 = arith.constant 0 : i32
    %c0_i32_1 = arith.constant 0 : i32
    return %c0_i32, %c0_i32_0 : i32, i32
  }
  func.func @transform_4(%arg0: i32) -> (i32, i32) {
    %c0_i32 = arith.constant 0 : i32
    %c0_i32_0 = arith.constant 0 : i32
    %c0_i32_1 = arith.constant 0 : i32
    return %c0_i32, %c0_i32_0 : i32, i32
  }
  func.func @transform_5(%arg0: i32) -> (i32, i32) {
    %c0_i32 = arith.constant 0 : i32
    %c0_i32_0 = arith.constant 0 : i32
    %c0_i32_1 = arith.constant 0 : i32
    return %c0_i32, %c0_i32_0 : i32, i32
  }
  func.func @transform_6(%arg0: i32) -> (i32, i32) {
    %c0_i32 = arith.constant 0 : i32
    %c0_i32_0 = arith.constant 0 : i32
    %c0_i32_1 = arith.constant 0 : i32
    return %c0_i32, %c0_i32_0 : i32, i32
  }
  func.func @transform_7(%arg0: i32) -> (i32, i32) {
    %c0_i32 = arith.constant 0 : i32
    %c0_i32_0 = arith.constant 0 : i32
    %c0_i32_1 = arith.constant 0 : i32
    return %c0_i32, %c0_i32_0 : i32, i32
  }
  func.func @transform_8(%arg0: i32) -> (i32, i32) {
    %c0_i32 = arith.constant 0 : i32
    %c0_i32_0 = arith.constant 0 : i32
    %c0_i32_1 = arith.constant 0 : i32
    return %c0_i32, %c0_i32_0 : i32, i32
  }
  func.func @transform_9(%arg0: i32) -> (i32, i32) {
    %c0_i32 = arith.constant 0 : i32
    %c0_i32_0 = arith.constant 0 : i32
    %c0_i32_1 = arith.constant 0 : i32
    return %c0_i32, %c0_i32_0 : i32, i32
  }
}

</mosaic_0001>

<llo_original>
// kernel: tpu_custom_call.1
$region0: #{tpu_custom_call.1}
  #allocation0 [shape = 'u32[]', space=smem, size = 0x4, offset = 0x4, fixed_abs, tag = 'smem constant byte address 0x4 - core index']
  #allocation1 [shape = 'u32[144,128]{1,0:T(1,128)}', space=vmem, size = 0x12000, scoped, tag = 'internal scratch']
  %s0 = inlined_call_operand.hbm [shape: f32[2,256], index: 0, kind: input, shape index: {}]
  %s1 = inlined_call_operand.hbm [shape: bf16[256,1024], index: 1, kind: input, shape index: {}]
  %s2 = inlined_call_operand.vmem [shape: f32[1,256], index: 2, kind: input, shape index: {}]
  %s3 = inlined_call_operand.hbm [shape: bf16[256,512], index: 3, kind: input, shape index: {}]
  %s4 = inlined_call_operand.vmem [shape: f32[1,128], index: 4, kind: input, shape index: {}]
  %s5 = inlined_call_operand.hbm [shape: bf16[128,128], index: 5, kind: input, shape index: {}]
  %s6 = inlined_call_operand.vmem [shape: f32[1,128], index: 6, kind: input, shape index: {}]
  %s7 = inlined_call_operand.hbm [shape: bf16[128,128], index: 7, kind: input, shape index: {}]
  %s8 = inlined_call_operand.vmem [shape: f32[1,128], index: 8, kind: input, shape index: {}]
  %s9 = inlined_call_operand.hbm [shape: f32[2,128], index: 9, kind: output, shape index: {}]
  %s10 = sld [smem:[#allocation0]]
  $region66: #{tpu_custom_call.1} parent=0
    _
  %s12 = ssub.s32 1, %s10
  %s13 = scalar_select 0, %s12, %s10
  $region1: #{tpu_custom_call.1} parent=0
    #allocation2 [shape = 'u8[2048]{0}', space=vmem, size = 0x800, scoped, tag = 'input window, operand 0, single buffered']
    #allocation3 [shape = 's32[1]{0}', space=sflag, size = 0x4, scoped, tag = 'scoped memory for tpu_custom_call.1']
    #allocation4 [shape = 's32[1]{0}', space=sflag, size = 0x4, scoped, tag = 'scoped memory for tpu_custom_call.1']
    #allocation5 [shape = 'u8[524288]{0}', space=vmem, size = 0x80000, scoped, tag = 'input window, operand 1, single buffered']
    #allocation6 [shape = 's32[1]{0}', space=sflag, size = 0x4, scoped, tag = 'scoped memory for tpu_custom_call.1']
    #allocation7 [shape = 'u8[262144]{0}', space=vmem, size = 0x40000, scoped, tag = 'input window, operand 3, single buffered']
    #allocation8 [shape = 'u8[32768]{0}', space=vmem, size = 0x8000, scoped, tag = 'input window, operand 5, single buffered']
    #allocation9 [shape = 's32[1]{0}', space=sflag, size = 0x4, scoped, tag = 'scoped memory for tpu_custom_call.1']
    #allocation10 [shape = 'u8[32768]{0}', space=vmem, size = 0x8000, scoped, tag = 'input window, operand 7, single buffered']
    #allocation11 [shape = 'u8[1024]{0}', space=vmem, size = 0x400, scoped, tag = 'output window, operand 0, single buffered']
    %14 = vsyncpa [#allocation3], 0
    %15 = vsyncpa [#allocation6], 0
    %16 = vsyncpa [#allocation9], 0
    %17 = vsyncpa [#allocation4], 0
    // Predicated region
    $region2: #{tpu_custom_call.1} parent=1 // pred_check
      _
    $region3: #{tpu_custom_call.1} parent=1 // pred_check_branch
      %19 = sbr.rel (0) target = $region5
    $region4: #{tpu_custom_call.1} parent=1 // pred_region
      %s21 = ssub.s32 64, 64
      %22 = vsyncadd [#allocation3], %s21
      %s24 = sshll.u32 [#allocation2], 4
      %s25 = int_to_ptr.vmem [resolvable:$true] %s24
      %27 = dma.hbm_to_vmem [thread:$0]  %s0, 64, %s25, [#allocation3]
    $region5: #{tpu_custom_call.1} parent=1 // pred_fallthru
      _
    // Predicated region
    $region6: #{tpu_custom_call.1} parent=1 // pred_check
      _
    $region7: #{tpu_custom_call.1} parent=1 // pred_check_branch
      %29 = sbr.rel (0) target = $region9
    $region8: #{tpu_custom_call.1} parent=1 // pred_region
      %s31 = ssub.s32 16384, 16384
      %32 = vsyncadd [#allocation6], %s31
      %s33 = sshll.u32 [#allocation5], 4
      %s34 = int_to_ptr.vmem [resolvable:$true] %s33
      %39 = dma.hbm_to_vmem [thread:$0]  %s1, 16384, %s34, [#allocation6], 512, 512, 32
    $region9: #{tpu_custom_call.1} parent=1 // pred_fallthru
      _
    // Predicated region
    $region10: #{tpu_custom_call.1} parent=1 // pred_check
      _
    $region11: #{tpu_custom_call.1} parent=1 // pred_check_branch
      %41 = sbr.rel (0) target = $region13
    $region12: #{tpu_custom_call.1} parent=1 // pred_region
      _
    $region13: #{tpu_custom_call.1} parent=1 // pred_fallthru
      _
    // Predicated region
    $region14: #{tpu_custom_call.1} parent=1 // pred_check
      _
    $region15: #{tpu_custom_call.1} parent=1 // pred_check_branch
      %43 = sbr.rel (0) target = $region17
    $region16: #{tpu_custom_call.1} parent=1 // pred_region
      %s45 = ssub.s32 8192, 8192
      %46 = vsyncadd [#allocation6], %s45
      %s47 = sshll.u32 [#allocation7], 4
      %s48 = int_to_ptr.vmem [resolvable:$true] %s47
      %53 = dma.hbm_to_vmem [thread:$0]  %s3, 8192, %s48, [#allocation6], 256, 256, 16
    $region17: #{tpu_custom_call.1} parent=1 // pred_fallthru
      _
    // Predicated region
    $region18: #{tpu_custom_call.1} parent=1 // pred_check
      _
    $region19: #{tpu_custom_call.1} parent=1 // pred_check_branch
      %55 = sbr.rel (0) target = $region21
    $region20: #{tpu_custom_call.1} parent=1 // pred_region
      _
    $region21: #{tpu_custom_call.1} parent=1 // pred_fallthru
      _
    // Predicated region
    $region22: #{tpu_custom_call.1} parent=1 // pred_check
      _
    $region23: #{tpu_custom_call.1} parent=1 // pred_check_branch
      %57 = sbr.rel (0) target = $region25
    $region24: #{tpu_custom_call.1} parent=1 // pred_region
      %s59 = ssub.s32 1024, 1024
      %60 = vsyncadd [#allocation9], %s59
      %s61 = sshll.u32 [#allocation8], 4
      %s62 = int_to_ptr.vmem [resolvable:$true] %s61
      %67 = dma.hbm_to_vmem [thread:$0]  %s5, 1024, %s62, [#allocation9], 64, 64, 4
    $region25: #{tpu_custom_call.1} parent=1 // pred_fallthru
      _
    // Predicated region
    $region26: #{tpu_custom_call.1} parent=1 // pred_check
      _
    $region27: #{tpu_custom_call.1} parent=1 // pred_check_branch
      %69 = sbr.rel (0) target = $region29
    $region28: #{tpu_custom_call.1} parent=1 // pred_region
      _
    $region29: #{tpu_custom_call.1} parent=1 // pred_fallthru
      _
    // Predicated region
    $region30: #{tpu_custom_call.1} parent=1 // pred_check
      _
    $region31: #{tpu_custom_call.1} parent=1 // pred_check_branch
      %71 = sbr.rel (0) target = $region33
    $region32: #{tpu_custom_call.1} parent=1 // pred_region
      %s73 = ssub.s32 1024, 1024
      %74 = vsyncadd [#allocation9], %s73
      %s75 = sshll.u32 [#allocation10], 4
      %s76 = int_to_ptr.vmem [resolvable:$true] %s75
      %81 = dma.hbm_to_vmem [thread:$0]  %s7, 1024, %s76, [#allocation9], 64, 64, 4
    $region33: #{tpu_custom_call.1} parent=1 // pred_fallthru
      _
    // Predicated region
    $region34: #{tpu_custom_call.1} parent=1 // pred_check
      _
    $region35: #{tpu_custom_call.1} parent=1 // pred_check_branch
      %83 = sbr.rel (0) target = $region37
    $region36: #{tpu_custom_call.1} parent=1 // pred_region
      _
    $region37: #{tpu_custom_call.1} parent=1 // pred_fallthru
      _
    // Predicated region
    $region38: #{tpu_custom_call.1} parent=1 // pred_check
      _
    $region39: #{tpu_custom_call.1} parent=1 // pred_check_branch
      %85 = sbr.rel (0) target = $region41
    $region40: #{tpu_custom_call.1} parent=1 // pred_region
      %86 = dma.done [#allocation3], 64
    $region41: #{tpu_custom_call.1} parent=1 // pred_fallthru
      _
    // Predicated region
    $region42: #{tpu_custom_call.1} parent=1 // pred_check
      _
    $region43: #{tpu_custom_call.1} parent=1 // pred_check_branch
      %88 = sbr.rel (0) target = $region45
    $region44: #{tpu_custom_call.1} parent=1 // pred_region
      %89 = dma.done [#allocation6], 16384
    $region45: #{tpu_custom_call.1} parent=1 // pred_fallthru
      _
    // Predicated region
    $region46: #{tpu_custom_call.1} parent=1 // pred_check
      _
    $region47: #{tpu_custom_call.1} parent=1 // pred_check_branch
      %91 = sbr.rel (0) target = $region49
    $region48: #{tpu_custom_call.1} parent=1 // pred_region
      %92 = dma.done [#allocation6], 8192
    $region49: #{tpu_custom_call.1} parent=1 // pred_fallthru
      _
    // Predicated region
    $region50: #{tpu_custom_call.1} parent=1 // pred_check
      _
    $region51: #{tpu_custom_call.1} parent=1 // pred_check_branch
      %94 = sbr.rel (0) target = $region53
    $region52: #{tpu_custom_call.1} parent=1 // pred_region
      %95 = dma.done [#allocation9], 1024
    $region53: #{tpu_custom_call.1} parent=1 // pred_fallthru
      _
    // Predicated region
    $region54: #{tpu_custom_call.1} parent=1 // pred_check
      _
    $region55: #{tpu_custom_call.1} parent=1 // pred_check_branch
      %97 = sbr.rel (0) target = $region57
    $region56: #{tpu_custom_call.1} parent=1 // pred_region
      %98 = dma.done [#allocation9], 1024
    $region57: #{tpu_custom_call.1} parent=1 // pred_fallthru
      _
    %v100 = vld [vmem:[#allocation2] sm:$0xf]
    %v103 = vunpack.c.l.s4 1983009808
    %v104 = vunpack.c.0.s8 %v103
    %v105 = vlaneseq
    %v106 = vshrl.u32 %v105, 7
    %v107 = vsub.s32 %v104, %v106
    %v108 = vrot.slane %v100, %v107
    %v109 = vcombine.high %v108, %v108
    %v112 = vpack.c.bf16 %v108, %v108
    %v113 = vpack.c.bf16 %v109, %v109
    %v114 = vld [vmem:[#allocation5] sm:$0xff]
    %v115 = vld [vmem:[#allocation5 + $0x8] sm:$0xff]
    %v116 = vld [vmem:[#allocation5 + $0x10] sm:$0xff]
    %v117 = vld [vmem:[#allocation5 + $0x18] sm:$0xff]
    %v118 = vld [vmem:[#allocation5 + $0x20] sm:$0xff]
    %v119 = vld [vmem:[#allocation5 + $0x28] sm:$0xff]
    %v120 = vld [vmem:[#allocation5 + $0x30] sm:$0xff]
    %v121 = vld [vmem:[#allocation5 + $0x38] sm:$0xff]
    %v122 = vld [vmem:[#allocation5 + $0x40] sm:$0xff]
    %v123 = vld [vmem:[#allocation5 + $0x48] sm:$0xff]
    %v124 = vld [vmem:[#allocation5 + $0x50] sm:$0xff]
    %v125 = vld [vmem:[#allocation5 + $0x58] sm:$0xff]
    %v126 = vld [vmem:[#allocation5 + $0x60] sm:$0xff]
    %v127 = vld [vmem:[#allocation5 + $0x68] sm:$0xff]
    %v128 = vld [vmem:[#allocation5 + $0x70] sm:$0xff]
    %v129 = vld [vmem:[#allocation5 + $0x78] sm:$0xff]
    %v130 = vld [vmem:[#allocation5 + $0x80] sm:$0xff]
    %v131 = vld [vmem:[#allocation5 + $0x88] sm:$0xff]
    %v132 = vld [vmem:[#allocation5 + $0x90] sm:$0xff]
    %v133 = vld [vmem:[#allocation5 + $0x98] sm:$0xff]
    %v134 = vld [vmem:[#allocation5 + $0xa0] sm:$0xff]
    %v135 = vld [vmem:[#allocation5 + $0xa8] sm:$0xff]
    %v136 = vld [vmem:[#allocation5 + $0xb0] sm:$0xff]
    %v137 = vld [vmem:[#allocation5 + $0xb8] sm:$0xff]
    %v138 = vld [vmem:[#allocation5 + $0xc0] sm:$0xff]
    %v139 = vld [vmem:[#allocation5 + $0xc8] sm:$0xff]
    %v140 = vld [vmem:[#allocation5 + $0xd0] sm:$0xff]
    %v141 = vld [vmem:[#allocation5 + $0xd8] sm:$0xff]
    %v142 = vld [vmem:[#allocation5 + $0xe0] sm:$0xff]
    %v143 = vld [vmem:[#allocation5 + $0xe8] sm:$0xff]
    %v144 = vld [vmem:[#allocation5 + $0xf0] sm:$0xff]
    %v145 = vld [vmem:[#allocation5 + $0xf8] sm:$0xff]
    %v146 = vld [vmem:[#allocation5 + $0x100] sm:$0xff]
    %v147 = vld [vmem:[#allocation5 + $0x108] sm:$0xff]
    %v148 = vld [vmem:[#allocation5 + $0x110] sm:$0xff]
    %v149 = vld [vmem:[#allocation5 + $0x118] sm:$0xff]
    %v150 = vld [vmem:[#allocation5 + $0x120] sm:$0xff]
    %v151 = vld [vmem:[#allocation5 + $0x128] sm:$0xff]
    %v152 = vld [vmem:[#allocation5 + $0x130] sm:$0xff]
    %v153 = vld [vmem:[#allocation5 + $0x138] sm:$0xff]
    %v154 = vld [vmem:[#allocation5 + $0x140] sm:$0xff]
    %v155 = vld [vmem:[#allocation5 + $0x148] sm:$0xff]
    %v156 = vld [vmem:[#allocation5 + $0x150] sm:$0xff]
    %v157 = vld [vmem:[#allocation5 + $0x158] sm:$0xff]
    %v158 = vld [vmem:[#allocation5 + $0x160] sm:$0xff]
    %v159 = vld [vmem:[#allocation5 + $0x168] sm:$0xff]
    %v160 = vld [vmem:[#allocation5 + $0x170] sm:$0xff]
    %v161 = vld [vmem:[#allocation5 + $0x178] sm:$0xff]
    %v162 = vld [vmem:[#allocation5 + $0x180] sm:$0xff]
    %v163 = vld [vmem:[#allocation5 + $0x188] sm:$0xff]
    %v164 = vld [vmem:[#allocation5 + $0x190] sm:$0xff]
    %v165 = vld [vmem:[#allocation5 + $0x198] sm:$0xff]
    %v166 = vld [vmem:[#allocation5 + $0x1a0] sm:$0xff]
    %v167 = vld [vmem:[#allocation5 + $0x1a8] sm:$0xff]
    %v168 = vld [vmem:[#allocation5 + $0x1b0] sm:$0xff]
    %v169 = vld [vmem:[#allocation5 + $0x1b8] sm:$0xff]
    %v170 = vld [vmem:[#allocation5 + $0x1c0] sm:$0xff]
    %v171 = vld [vmem:[#allocation5 + $0x1c8] sm:$0xff]
    %v172 = vld [vmem:[#allocation5 + $0x1d0] sm:$0xff]
    %v173 = vld [vmem:[#allocation5 + $0x1d8] sm:$0xff]
    %v174 = vld [vmem:[#allocation5 + $0x1e0] sm:$0xff]
    %v175 = vld [vmem:[#allocation5 + $0x1e8] sm:$0xff]
    %v176 = vld [vmem:[#allocation5 + $0x1f0] sm:$0xff]
    %v177 = vld [vmem:[#allocation5 + $0x1f8] sm:$0xff]
    %v178 = vld [vmem:[#allocation5 + $0x200] sm:$0xff]
    %v179 = vld [vmem:[#allocation5 + $0x208] sm:$0xff]
    %v180 = vld [vmem:[#allocation5 + $0x210] sm:$0xff]
    %v181 = vld [vmem:[#allocation5 + $0x218] sm:$0xff]
    %v182 = vld [vmem:[#allocation5 + $0x220] sm:$0xff]
    %v183 = vld [vmem:[#allocation5 + $0x228] sm:$0xff]
    %v184 = vld [vmem:[#allocation5 + $0x230] sm:$0xff]
    %v185 = vld [vmem:[#allocation5 + $0x238] sm:$0xff]
    %v186 = vld [vmem:[#allocation5 + $0x240] sm:$0xff]
    %v187 = vld [vmem:[#allocation5 + $0x248] sm:$0xff]
    %v188 = vld [vmem:[#allocation5 + $0x250] sm:$0xff]
    %v189 = vld [vmem:[#allocation5 + $0x258] sm:$0xff]
    %v190 = vld [vmem:[#allocation5 + $0x260] sm:$0xff]
    %v191 = vld [vmem:[#allocation5 + $0x268] sm:$0xff]
    %v192 = vld [vmem:[#allocation5 + $0x270] sm:$0xff]
    %v193 = vld [vmem:[#allocation5 + $0x278] sm:$0xff]
    %v194 = vld [vmem:[#allocation5 + $0x280] sm:$0xff]
    %v195 = vld [vmem:[#allocation5 + $0x288] sm:$0xff]
    %v196 = vld [vmem:[#allocation5 + $0x290] sm:$0xff]
    %v197 = vld [vmem:[#allocation5 + $0x298] sm:$0xff]
    %v198 = vld [vmem:[#allocation5 + $0x2a0] sm:$0xff]
    %v199 = vld [vmem:[#allocation5 + $0x2a8] sm:$0xff]
    %v200 = vld [vmem:[#allocation5 + $0x2b0] sm:$0xff]
    %v201 = vld [vmem:[#allocation5 + $0x2b8] sm:$0xff]
    %v202 = vld [vmem:[#allocation5 + $0x2c0] sm:$0xff]
    %v203 = vld [vmem:[#allocation5 + $0x2c8] sm:$0xff]
    %v204 = vld [vmem:[#allocation5 + $0x2d0] sm:$0xff]
    %v205 = vld [vmem:[#allocation5 + $0x2d8] sm:$0xff]
    %v206 = vld [vmem:[#allocation5 + $0x2e0] sm:$0xff]
    %v207 = vld [vmem:[#allocation5 + $0x2e8] sm:$0xff]
    %v208 = vld [vmem:[#allocation5 + $0x2f0] sm:$0xff]
    %v209 = vld [vmem:[#allocation5 + $0x2f8] sm:$0xff]
    %v210 = vld [vmem:[#allocation5 + $0x300] sm:$0xff]
    %v211 = vld [vmem:[#allocation5 + $0x308] sm:$0xff]
    %v212 = vld [vmem:[#allocation5 + $0x310] sm:$0xff]
    %v213 = vld [vmem:[#allocation5 + $0x318] sm:$0xff]
    %v214 = vld [vmem:[#allocation5 + $0x320] sm:$0xff]
    %v215 = vld [vmem:[#allocation5 + $0x328] sm:$0xff]
    %v216 = vld [vmem:[#allocation5 + $0x330] sm:$0xff]
    %v217 = vld [vmem:[#allocation5 + $0x338] sm:$0xff]
    %v218 = vld [vmem:[#allocation5 + $0x340] sm:$0xff]
    %v219 = vld [vmem:[#allocation5 + $0x348] sm:$0xff]
    %v220 = vld [vmem:[#allocation5 + $0x350] sm:$0xff]
    %v221 = vld [vmem:[#allocation5 + $0x358] sm:$0xff]
    %v222 = vld [vmem:[#allocation5 + $0x360] sm:$0xff]
    %v223 = vld [vmem:[#allocation5 + $0x368] sm:$0xff]
    %v224 = vld [vmem:[#allocation5 + $0x370] sm:$0xff]
    %v225 = vld [vmem:[#allocation5 + $0x378] sm:$0xff]
    %v226 = vld [vmem:[#allocation5 + $0x380] sm:$0xff]
    %v227 = vld [vmem:[#allocation5 + $0x388] sm:$0xff]
    %v228 = vld [vmem:[#allocation5 + $0x390] sm:$0xff]
    %v229 = vld [vmem:[#allocation5 + $0x398] sm:$0xff]
    %v230 = vld [vmem:[#allocation5 + $0x3a0] sm:$0xff]
    %v231 = vld [vmem:[#allocation5 + $0x3a8] sm:$0xff]
    %v232 = vld [vmem:[#allocation5 + $0x3b0] sm:$0xff]
    %v233 = vld [vmem:[#allocation5 + $0x3b8] sm:$0xff]
    %v234 = vld [vmem:[#allocation5 + $0x3c0] sm:$0xff]
    %v235 = vld [vmem:[#allocation5 + $0x3c8] sm:$0xff]
    %v236 = vld [vmem:[#allocation5 + $0x3d0] sm:$0xff]
    %v237 = vld [vmem:[#allocation5 + $0x3d8] sm:$0xff]
    %v238 = vld [vmem:[#allocation5 + $0x3e0] sm:$0xff]
    %v239 = vld [vmem:[#allocation5 + $0x3e8] sm:$0xff]
    %v240 = vld [vmem:[#allocation5 + $0x3f0] sm:$0xff]
    %v241 = vld [vmem:[#allocation5 + $0x3f8] sm:$0xff]
    %v370 = vunpack.c.l.b16 %v114
    %v371 = vunpack.c.h.b16 %v114
    %v372 = vunpack.c.l.b16 %v115
    %v373 = vunpack.c.h.b16 %v115
    %v374 = vunpack.c.l.b16 %v116
    %v375 = vunpack.c.h.b16 %v116
    %v376 = vunpack.c.l.b16 %v117
    %v377 = vunpack.c.h.b16 %v117
    %v378 = vunpack.c.l.b16 %v118
    %v379 = vunpack.c.h.b16 %v118
    %v380 = vunpack.c.l.b16 %v119
    %v381 = vunpack.c.h.b16 %v119
    %v382 = vunpack.c.l.b16 %v120
    %v383 = vunpack.c.h.b16 %v120
    %v384 = vunpack.c.l.b16 %v121
    %v385 = vunpack.c.h.b16 %v121
    %v386 = vunpack.c.l.b16 %v122
    %v387 = vunpack.c.h.b16 %v122
    %v388 = vunpack.c.l.b16 %v123
    %v389 = vunpack.c.h.b16 %v123
    %v390 = vunpack.c.l.b16 %v124
    %v391 = vunpack.c.h.b16 %v124
    %v392 = vunpack.c.l.b16 %v125
    %v393 = vunpack.c.h.b16 %v125
    %v394 = vunpack.c.l.b16 %v126
    %v395 = vunpack.c.h.b16 %v126
    %v396 = vunpack.c.l.b16 %v127
    %v397 = vunpack.c.h.b16 %v127
    %v398 = vunpack.c.l.b16 %v128
    %v399 = vunpack.c.h.b16 %v128
    %v400 = vunpack.c.l.b16 %v129
    %v401 = vunpack.c.h.b16 %v129
    %v402 = vunpack.c.l.b16 %v130
    %v403 = vunpack.c.h.b16 %v130
    %v404 = vunpack.c.l.b16 %v131
    %v405 = vunpack.c.h.b16 %v131
    %v406 = vunpack.c.l.b16 %v132
    %v407 = vunpack.c.h.b16 %v132
    %v408 = vunpack.c.l.b16 %v133
    %v409 = vunpack.c.h.b16 %v133
    %v410 = vunpack.c.l.b16 %v134
    %v411 = vunpack.c.h.b16 %v134
    %v412 = vunpack.c.l.b16 %v135
    %v413 = vunpack.c.h.b16 %v135
    %v414 = vunpack.c.l.b16 %v136
    %v415 = vunpack.c.h.b16 %v136
    %v416 = vunpack.c.l.b16 %v137
    %v417 = vunpack.c.h.b16 %v137
    %v418 = vunpack.c.l.b16 %v138
    %v419 = vunpack.c.h.b16 %v138
    %v420 = vunpack.c.l.b16 %v139
    %v421 = vunpack.c.h.b16 %v139
    %v422 = vunpack.c.l.b16 %v140
    %v423 = vunpack.c.h.b16 %v140
    %v424 = vunpack.c.l.b16 %v141
    %v425 = vunpack.c.h.b16 %v141
    %v426 = vunpack.c.l.b16 %v142
    %v427 = vunpack.c.h.b16 %v142
    %v428 = vunpack.c.l.b16 %v143
    %v429 = vunpack.c.h.b16 %v143
    %v430 = vunpack.c.l.b16 %v144
    %v431 = vunpack.c.h.b16 %v144
    %v432 = vunpack.c.l.b16 %v145
    %v433 = vunpack.c.h.b16 %v145
    %v434 = vunpack.c.l.b16 %v146
    %v435 = vunpack.c.h.b16 %v146
    %v436 = vunpack.c.l.b16 %v147
    %v437 = vunpack.c.h.b16 %v147
    %v438 = vunpack.c.l.b16 %v148
    %v439 = vunpack.c.h.b16 %v148
    %v440 = vunpack.c.l.b16 %v149
    %v441 = vunpack.c.h.b16 %v149
    %v442 = vunpack.c.l.b16 %v150
    %v443 = vunpack.c.h.b16 %v150
    %v444 = vunpack.c.l.b16 %v151
    %v445 = vunpack.c.h.b16 %v151
    %v446 = vunpack.c.l.b16 %v152
    %v447 = vunpack.c.h.b16 %v152
    %v448 = vunpack.c.l.b16 %v153
    %v449 = vunpack.c.h.b16 %v153
    %v450 = vunpack.c.l.b16 %v154
    %v451 = vunpack.c.h.b16 %v154
    %v452 = vunpack.c.l.b16 %v155
    %v453 = vunpack.c.h.b16 %v155
    %v454 = vunpack.c.l.b16 %v156
    %v455 = vunpack.c.h.b16 %v156
    %v456 = vunpack.c.l.b16 %v157
    %v457 = vunpack.c.h.b16 %v157
    %v458 = vunpack.c.l.b16 %v158
    %v459 = vunpack.c.h.b16 %v158
    %v460 = vunpack.c.l.b16 %v159
    %v461 = vunpack.c.h.b16 %v159
    %v462 = vunpack.c.l.b16 %v160
    %v463 = vunpack.c.h.b16 %v160
    %v464 = vunpack.c.l.b16 %v161
    %v465 = vunpack.c.h.b16 %v161
    %v466 = vunpack.c.l.b16 %v162
    %v467 = vunpack.c.h.b16 %v162
    %v468 = vunpack.c.l.b16 %v163
    %v469 = vunpack.c.h.b16 %v163
    %v470 = vunpack.c.l.b16 %v164
    %v471 = vunpack.c.h.b16 %v164
    %v472 = vunpack.c.l.b16 %v165
    %v473 = vunpack.c.h.b16 %v165
    %v474 = vunpack.c.l.b16 %v166
    %v475 = vunpack.c.h.b16 %v166
    %v476 = vunpack.c.l.b16 %v167
    %v477 = vunpack.c.h.b16 %v167
    %v478 = vunpack.c.l.b16 %v168
    %v479 = vunpack.c.h.b16 %v168
    %v480 = vunpack.c.l.b16 %v169
    %v481 = vunpack.c.h.b16 %v169
    %v482 = vunpack.c.l.b16 %v170
    %v483 = vunpack.c.h.b16 %v170
    %v484 = vunpack.c.l.b16 %v171
    %v485 = vunpack.c.h.b16 %v171
    %v486 = vunpack.c.l.b16 %v172
    %v487 = vunpack.c.h.b16 %v172
    %v488 = vunpack.c.l.b16 %v173
    %v489 = vunpack.c.h.b16 %v173
    %v490 = vunpack.c.l.b16 %v174
    %v491 = vunpack.c.h.b16 %v174
    %v492 = vunpack.c.l.b16 %v175
    %v493 = vunpack.c.h.b16 %v175
    %v494 = vunpack.c.l.b16 %v176
    %v495 = vunpack.c.h.b16 %v176
    %v496 = vunpack.c.l.b16 %v177
    %v497 = vunpack.c.h.b16 %v177
    %v498 = vunpack.c.l.b16 %v178
    %v499 = vunpack.c.h.b16 %v178
    %v500 = vunpack.c.l.b16 %v179
    %v501 = vunpack.c.h.b16 %v179
    %v502 = vunpack.c.l.b16 %v180
    %v503 = vunpack.c.h.b16 %v180
    %v504 = vunpack.c.l.b16 %v181
    %v505 = vunpack.c.h.b16 %v181
    %v506 = vunpack.c.l.b16 %v182
    %v507 = vunpack.c.h.b16 %v182
    %v508 = vunpack.c.l.b16 %v183
    %v509 = vunpack.c.h.b16 %v183
    %v510 = vunpack.c.l.b16 %v184
    %v511 = vunpack.c.h.b16 %v184
    %v512 = vunpack.c.l.b16 %v185
    %v513 = vunpack.c.h.b16 %v185
    %v514 = vunpack.c.l.b16 %v186
    %v515 = vunpack.c.h.b16 %v186
    %v516 = vunpack.c.l.b16 %v187
    %v517 = vunpack.c.h.b16 %v187
    %v518 = vunpack.c.l.b16 %v188
    %v519 = vunpack.c.h.b16 %v188
    %v520 = vunpack.c.l.b16 %v189
    %v521 = vunpack.c.h.b16 %v189
    %v522 = vunpack.c.l.b16 %v190
    %v523 = vunpack.c.h.b16 %v190
    %v524 = vunpack.c.l.b16 %v191
    %v525 = vunpack.c.h.b16 %v191
    %v526 = vunpack.c.l.b16 %v192
    %v527 = vunpack.c.h.b16 %v192
    %v528 = vunpack.c.l.b16 %v193
    %v529 = vunpack.c.h.b16 %v193
    %v530 = vunpack.c.l.b16 %v194
    %v531 = vunpack.c.h.b16 %v194
    %v532 = vunpack.c.l.b16 %v195
    %v533 = vunpack.c.h.b16 %v195
    %v534 = vunpack.c.l.b16 %v196
    %v535 = vunpack.c.h.b16 %v196
    %v536 = vunpack.c.l.b16 %v197
    %v537 = vunpack.c.h.b16 %v197
    %v538 = vunpack.c.l.b16 %v198
    %v539 = vunpack.c.h.b16 %v198
    %v540 = vunpack.c.l.b16 %v199
    %v541 = vunpack.c.h.b16 %v199
    %v542 = vunpack.c.l.b16 %v200
    %v543 = vunpack.c.h.b16 %v200
    %v544 = vunpack.c.l.b16 %v201
    %v545 = vunpack.c.h.b16 %v201
    %v546 = vunpack.c.l.b16 %v202
    %v547 = vunpack.c.h.b16 %v202
    %v548 = vunpack.c.l.b16 %v203
    %v549 = vunpack.c.h.b16 %v203
    %v550 = vunpack.c.l.b16 %v204
    %v551 = vunpack.c.h.b16 %v204
    %v552 = vunpack.c.l.b16 %v205
    %v553 = vunpack.c.h.b16 %v205
    %v554 = vunpack.c.l.b16 %v206
    %v555 = vunpack.c.h.b16 %v206
    %v556 = vunpack.c.l.b16 %v207
    %v557 = vunpack.c.h.b16 %v207
    %v558 = vunpack.c.l.b16 %v208
    %v559 = vunpack.c.h.b16 %v208
    %v560 = vunpack.c.l.b16 %v209
    %v561 = vunpack.c.h.b16 %v209
    %v562 = vunpack.c.l.b16 %v210
    %v563 = vunpack.c.h.b16 %v210
    %v564 = vunpack.c.l.b16 %v211
    %v565 = vunpack.c.h.b16 %v211
    %v566 = vunpack.c.l.b16 %v212
    %v567 = vunpack.c.h.b16 %v212
    %v568 = vunpack.c.l.b16 %v213
    %v569 = vunpack.c.h.b16 %v213
    %v570 = vunpack.c.l.b16 %v214
    %v571 = vunpack.c.h.b16 %v214
    %v572 = vunpack.c.l.b16 %v215
    %v573 = vunpack.c.h.b16 %v215
    %v574 = vunpack.c.l.b16 %v216
    %v575 = vunpack.c.h.b16 %v216
    %v576 = vunpack.c.l.b16 %v217
    %v577 = vunpack.c.h.b16 %v217
    %v578 = vunpack.c.l.b16 %v218
    %v579 = vunpack.c.h.b16 %v218
    %v580 = vunpack.c.l.b16 %v219
    %v581 = vunpack.c.h.b16 %v219
    %v582 = vunpack.c.l.b16 %v220
    %v583 = vunpack.c.h.b16 %v220
    %v584 = vunpack.c.l.b16 %v221
    %v585 = vunpack.c.h.b16 %v221
    %v586 = vunpack.c.l.b16 %v222
    %v587 = vunpack.c.h.b16 %v222
    %v588 = vunpack.c.l.b16 %v223
    %v589 = vunpack.c.h.b16 %v223
    %v590 = vunpack.c.l.b16 %v224
    %v591 = vunpack.c.h.b16 %v224
    %v592 = vunpack.c.l.b16 %v225
    %v593 = vunpack.c.h.b16 %v225
    %v594 = vunpack.c.l.b16 %v226
    %v595 = vunpack.c.h.b16 %v226
    %v596 = vunpack.c.l.b16 %v227
    %v597 = vunpack.c.h.b16 %v227
    %v598 = vunpack.c.l.b16 %v228
    %v599 = vunpack.c.h.b16 %v228
    %v600 = vunpack.c.l.b16 %v229
    %v601 = vunpack.c.h.b16 %v229
    %v602 = vunpack.c.l.b16 %v230
    %v603 = vunpack.c.h.b16 %v230
    %v604 = vunpack.c.l.b16 %v231
    %v605 = vunpack.c.h.b16 %v231
    %v606 = vunpack.c.l.b16 %v232
    %v607 = vunpack.c.h.b16 %v232
    %v608 = vunpack.c.l.b16 %v233
    %v609 = vunpack.c.h.b16 %v233
    %v610 = vunpack.c.l.b16 %v234
    %v611 = vunpack.c.h.b16 %v234
    %v612 = vunpack.c.l.b16 %v235
    %v613 = vunpack.c.h.b16 %v235
    %v614 = vunpack.c.l.b16 %v236
    %v615 = vunpack.c.h.b16 %v236
    %v616 = vunpack.c.l.b16 %v237
    %v617 = vunpack.c.h.b16 %v237
    %v618 = vunpack.c.l.b16 %v238
    %v619 = vunpack.c.h.b16 %v238
    %v620 = vunpack.c.l.b16 %v239
    %v621 = vunpack.c.h.b16 %v239
    %v622 = vunpack.c.l.b16 %v240
    %v623 = vunpack.c.h.b16 %v240
    %v624 = vunpack.c.l.b16 %v241
    %v625 = vunpack.c.h.b16 %v241
    %v626 = vpack.c.b16 %v378, %v370
    %v627 = vpack.c.b16 %v379, %v371
    %v628 = vpack.c.b16 %v380, %v372
    %v629 = vpack.c.b16 %v381, %v373
    %v630 = vpack.c.b16 %v382, %v374
    %v631 = vpack.c.b16 %v383, %v375
    %v632 = vpack.c.b16 %v384, %v376
    %v633 = vpack.c.b16 %v385, %v377
    %v634 = vpack.c.b16 %v394, %v386
    %v635 = vpack.c.b16 %v395, %v387
    %v636 = vpack.c.b16 %v396, %v388
    %v637 = vpack.c.b16 %v397, %v389
    %v638 = vpack.c.b16 %v398, %v390
    %v639 = vpack.c.b16 %v399, %v391
    %v640 = vpack.c.b16 %v400, %v392
    %v641 = vpack.c.b16 %v401, %v393
    %v642 = vpack.c.b16 %v410, %v402
    %v643 = vpack.c.b16 %v411, %v403
    %v644 = vpack.c.b16 %v412, %v404
    %v645 = vpack.c.b16 %v413, %v405
    %v646 = vpack.c.b16 %v414, %v406
    %v647 = vpack.c.b16 %v415, %v407
    %v648 = vpack.c.b16 %v416, %v408
    %v649 = vpack.c.b16 %v417, %v409
    %v650 = vpack.c.b16 %v426, %v418
    %v651 = vpack.c.b16 %v427, %v419
    %v652 = vpack.c.b16 %v428, %v420
    %v653 = vpack.c.b16 %v429, %v421
    %v654 = vpack.c.b16 %v430, %v422
    %v655 = vpack.c.b16 %v431, %v423
    %v656 = vpack.c.b16 %v432, %v424
    %v657 = vpack.c.b16 %v433, %v425
    %v658 = vpack.c.b16 %v442, %v434
    %v659 = vpack.c.b16 %v443, %v435
    %v660 = vpack.c.b16 %v444, %v436
    %v661 = vpack.c.b16 %v445, %v437
    %v662 = vpack.c.b16 %v446, %v438
    %v663 = vpack.c.b16 %v447, %v439
    %v664 = vpack.c.b16 %v448, %v440
    %v665 = vpack.c.b16 %v449, %v441
    %v666 = vpack.c.b16 %v458, %v450
    %v667 = vpack.c.b16 %v459, %v451
    %v668 = vpack.c.b16 %v460, %v452
    %v669 = vpack.c.b16 %v461, %v453
    %v670 = vpack.c.b16 %v462, %v454
    %v671 = vpack.c.b16 %v463, %v455
    %v672 = vpack.c.b16 %v464, %v456
    %v673 = vpack.c.b16 %v465, %v457
    %v674 = vpack.c.b16 %v474, %v466
    %v675 = vpack.c.b16 %v475, %v467
    %v676 = vpack.c.b16 %v476, %v468
    %v677 = vpack.c.b16 %v477, %v469
    %v678 = vpack.c.b16 %v478, %v470
    %v679 = vpack.c.b16 %v479, %v471
    %v680 = vpack.c.b16 %v480, %v472
    %v681 = vpack.c.b16 %v481, %v473
    %v682 = vpack.c.b16 %v490, %v482
    %v683 = vpack.c.b16 %v491, %v483
    %v684 = vpack.c.b16 %v492, %v484
    %v685 = vpack.c.b16 %v493, %v485
    %v686 = vpack.c.b16 %v494, %v486
    %v687 = vpack.c.b16 %v495, %v487
    %v688 = vpack.c.b16 %v496, %v488
    %v689 = vpack.c.b16 %v497, %v489
    %v690 = vpack.c.b16 %v506, %v498
    %v691 = vpack.c.b16 %v507, %v499
    %v692 = vpack.c.b16 %v508, %v500
    %v693 = vpack.c.b16 %v509, %v501
    %v694 = vpack.c.b16 %v510, %v502
    %v695 = vpack.c.b16 %v511, %v503
    %v696 = vpack.c.b16 %v512, %v504
    %v697 = vpack.c.b16 %v513, %v505
    %v698 = vpack.c.b16 %v522, %v514
    %v699 = vpack.c.b16 %v523, %v515
    %v700 = vpack.c.b16 %v524, %v516
    %v701 = vpack.c.b16 %v525, %v517
    %v702 = vpack.c.b16 %v526, %v518
    %v703 = vpack.c.b16 %v527, %v519
    %v704 = vpack.c.b16 %v528, %v520
    %v705 = vpack.c.b16 %v529, %v521
    %v706 = vpack.c.b16 %v538, %v530
    %v707 = vpack.c.b16 %v539, %v531
    %v708 = vpack.c.b16 %v540, %v532
    %v709 = vpack.c.b16 %v541, %v533
    %v710 = vpack.c.b16 %v542, %v534
    %v711 = vpack.c.b16 %v543, %v535
    %v712 = vpack.c.b16 %v544, %v536
    %v713 = vpack.c.b16 %v545, %v537
    %v714 = vpack.c.b16 %v554, %v546
    %v715 = vpack.c.b16 %v555, %v547
    %v716 = vpack.c.b16 %v556, %v548
    %v717 = vpack.c.b16 %v557, %v549
    %v718 = vpack.c.b16 %v558, %v550
    %v719 = vpack.c.b16 %v559, %v551
    %v720 = vpack.c.b16 %v560, %v552
    %v721 = vpack.c.b16 %v561, %v553
    %v722 = vpack.c.b16 %v570, %v562
    %v723 = vpack.c.b16 %v571, %v563
    %v724 = vpack.c.b16 %v572, %v564
    %v725 = vpack.c.b16 %v573, %v565
    %v726 = vpack.c.b16 %v574, %v566
    %v727 = vpack.c.b16 %v575, %v567
    %v728 = vpack.c.b16 %v576, %v568
    %v729 = vpack.c.b16 %v577, %v569
    %v730 = vpack.c.b16 %v586, %v578
    %v731 = vpack.c.b16 %v587, %v579
    %v732 = vpack.c.b16 %v588, %v580
    %v733 = vpack.c.b16 %v589, %v581
    %v734 = vpack.c.b16 %v590, %v582
    %v735 = vpack.c.b16 %v591, %v583
    %v736 = vpack.c.b16 %v592, %v584
    %v737 = vpack.c.b16 %v593, %v585
    %v738 = vpack.c.b16 %v602, %v594
    %v739 = vpack.c.b16 %v603, %v595
    %v740 = vpack.c.b16 %v604, %v596
    %v741 = vpack.c.b16 %v605, %v597
    %v742 = vpack.c.b16 %v606, %v598
    %v743 = vpack.c.b16 %v607, %v599
    %v744 = vpack.c.b16 %v608, %v600
    %v745 = vpack.c.b16 %v609, %v601
    %v746 = vpack.c.b16 %v618, %v610
    %v747 = vpack.c.b16 %v619, %v611
    %v748 = vpack.c.b16 %v620, %v612
    %v749 = vpack.c.b16 %v621, %v613
    %v750 = vpack.c.b16 %v622, %v614
    %v751 = vpack.c.b16 %v623, %v615
    %v752 = vpack.c.b16 %v624, %v616
    %v753 = vpack.c.b16 %v625, %v617
    %882 = vmatprep.subr.bf16.mxu0 %v683
    %883 = vmatpush1.bf16.msra.mxu0 %v682
    %884 = vmatprep.subr.bf16.mxu0 %v675
    %885 = vmatpush1.bf16.msra.mxu0 %v674
    %886 = vmatprep.subr.bf16.mxu0 %v667
    %887 = vmatpush1.bf16.msra.mxu0 %v666
    %888 = vmatprep.subr.bf16.mxu0 %v659
    %889 = vmatpush1.bf16.msra.mxu0 %v658
    %890 = vmatprep.subr.bf16.mxu0 %v651
    %891 = vmatpush1.bf16.msra.mxu0 %v650
    %892 = vmatprep.subr.bf16.mxu0 %v643
    %893 = vmatpush1.bf16.msra.mxu0 %v642
    %894 = vmatprep.subr.bf16.mxu0 %v635
    %895 = vmatpush1.bf16.msra.mxu0 %v634
    %896 = vmatprep.subr.bf16.mxu0 %v627
    %897 = vmatpush1.bf16.msra.mxu0 %v626
    %898 = vmatprep.subr.bf16.mxu0 %v747
    %899 = vmatpush2.bf16.msra.mxu0 %v746
    %900 = vmatprep.subr.bf16.mxu0 %v739
    %901 = vmatpush2.bf16.msra.mxu0 %v738
    %902 = vmatprep.subr.bf16.mxu0 %v731
    %903 = vmatpush2.bf16.msra.mxu0 %v730
    %904 = vmatprep.subr.bf16.mxu0 %v723
    %905 = vmatpush2.bf16.msra.mxu0 %v722
    %906 = vmatprep.subr.bf16.mxu0 %v715
    %907 = vmatpush2.bf16.msra.mxu0 %v714
    %908 = vmatprep.subr.bf16.mxu0 %v707
    %909 = vmatpush2.bf16.msra.mxu0 %v706
    %910 = vmatprep.subr.bf16.mxu0 %v699
    %911 = vmatpush2.bf16.msra.mxu0 %v698
    %912 = vmatprep.subr.bf16.mxu0 %v691
    %913 = vmatpush2.bf16.msra.mxu0 %v690
    %914 = vmatprep.mubr.bf16.mxu0 %v113
    %915 = vmatmul.mubr.bf16.gmra.mxu0 %v112
    %v916 = vpop.f32.mrf.mxu0
    %v917 = vadd.f32 0.0, %v916
    %v918 = vpop.f32.mrf.mxu0
    %v919 = vadd.f32 0.0, %v918
    %v920 = vpop.f32.mrf.mxu0
    %v921 = vpop.f32.mrf.mxu0
    %922 = vdwg.mxu0
    %923 = vmatprep.subr.bf16.mxu0 %v685
    %924 = vmatpush1.bf16.msra.mxu0 %v684
    %925 = vmatprep.subr.bf16.mxu0 %v677
    %926 = vmatpush1.bf16.msra.mxu0 %v676
    %927 = vmatprep.subr.bf16.mxu0 %v669
    %928 = vmatpush1.bf16.msra.mxu0 %v668
    %929 = vmatprep.subr.bf16.mxu0 %v661
    %930 = vmatpush1.bf16.msra.mxu0 %v660
    %931 = vmatprep.subr.bf16.mxu0 %v653
    %932 = vmatpush1.bf16.msra.mxu0 %v652
    %933 = vmatprep.subr.bf16.mxu0 %v645
    %934 = vmatpush1.bf16.msra.mxu0 %v644
    %935 = vmatprep.subr.bf16.mxu0 %v637
    %936 = vmatpush1.bf16.msra.mxu0 %v636
    %937 = vmatprep.subr.bf16.mxu0 %v629
    %938 = vmatpush1.bf16.msra.mxu0 %v628
    %939 = vmatprep.subr.bf16.mxu0 %v749
    %940 = vmatpush2.bf16.msra.mxu0 %v748
    %941 = vmatprep.subr.bf16.mxu0 %v741
    %942 = vmatpush2.bf16.msra.mxu0 %v740
    %943 = vmatprep.subr.bf16.mxu0 %v733
    %944 = vmatpush2.bf16.msra.mxu0 %v732
    %945 = vmatprep.subr.bf16.mxu0 %v725
    %946 = vmatpush2.bf16.msra.mxu0 %v724
    %947 = vmatprep.subr.bf16.mxu0 %v717
    %948 = vmatpush2.bf16.msra.mxu0 %v716
    %949 = vmatprep.subr.bf16.mxu0 %v709
    %950 = vmatpush2.bf16.msra.mxu0 %v708
    %951 = vmatprep.subr.bf16.mxu0 %v701
    %952 = vmatpush2.bf16.msra.mxu0 %v700
    %953 = vmatprep.subr.bf16.mxu0 %v693
    %954 = vmatpush2.bf16.msra.mxu0 %v692
    %955 = vmatprep.mubr.bf16.mxu0 %v113
    %956 = vmatmul.mubr.bf16.gmra.mxu0 %v112
    %v957 = vpop.f32.mrf.mxu0
    %v958 = vadd.f32 0.0, %v957
    %v959 = vpop.f32.mrf.mxu0
    %v960 = vadd.f32 0.0, %v959
    %v961 = vpop.f32.mrf.mxu0
    %v962 = vpop.f32.mrf.mxu0
    %963 = vdwg.mxu0
    %964 = vmatprep.subr.bf16.mxu0 %v687
    %965 = vmatpush1.bf16.msra.mxu0 %v686
    %966 = vmatprep.subr.bf16.mxu0 %v679
    %967 = vmatpush1.bf16.msra.mxu0 %v678
    %968 = vmatprep.subr.bf16.mxu0 %v671
    %969 = vmatpush1.bf16.msra.mxu0 %v670
    %970 = vmatprep.subr.bf16.mxu0 %v663
    %971 = vmatpush1.bf16.msra.mxu0 %v662
    %972 = vmatprep.subr.bf16.mxu0 %v655
    %973 = vmatpush1.bf16.msra.mxu0 %v654
    %974 = vmatprep.subr.bf16.mxu0 %v647
    %975 = vmatpush1.bf16.msra.mxu0 %v646
    %976 = vmatprep.subr.bf16.mxu0 %v639
    %977 = vmatpush1.bf16.msra.mxu0 %v638
    %978 = vmatprep.subr.bf16.mxu0 %v631
    %979 = vmatpush1.bf16.msra.mxu0 %v630
    %980 = vmatprep.subr.bf16.mxu0 %v751
    %981 = vmatpush2.bf16.msra.mxu0 %v750
    %982 = vmatprep.subr.bf16.mxu0 %v743
    %983 = vmatpush2.bf16.msra.mxu0 %v742
    %984 = vmatprep.subr.bf16.mxu0 %v735
    %985 = vmatpush2.bf16.msra.mxu0 %v734
    %986 = vmatprep.subr.bf16.mxu0 %v727
    %987 = vmatpush2.bf16.msra.mxu0 %v726
    %988 = vmatprep.subr.bf16.mxu0 %v719
    %989 = vmatpush2.bf16.msra.mxu0 %v718
    %990 = vmatprep.subr.bf16.mxu0 %v711
    %991 = vmatpush2.bf16.msra.mxu0 %v710
    %992 = vmatprep.subr.bf16.mxu0 %v703
    %993 = vmatpush2.bf16.msra.mxu0 %v702
    %994 = vmatprep.subr.bf16.mxu0 %v695
    %995 = vmatpush2.bf16.msra.mxu0 %v694
    %996 = vmatprep.mubr.bf16.mxu0 %v113
    %997 = vmatmul.mubr.bf16.gmra.mxu0 %v112
    %v998 = vpop.f32.mrf.mxu0
    %v999 = vadd.f32 0.0, %v998
    %v1000 = vpop.f32.mrf.mxu0
    %v1001 = vadd.f32 0.0, %v1000
    %v1002 = vpop.f32.mrf.mxu0
    %v1003 = vpop.f32.mrf.mxu0
    %1004 = vdwg.mxu0
    %1005 = vmatprep.subr.bf16.mxu0 %v689
    %1006 = vmatpush1.bf16.msra.mxu0 %v688
    %1007 = vmatprep.subr.bf16.mxu0 %v681
    %1008 = vmatpush1.bf16.msra.mxu0 %v680
    %1009 = vmatprep.subr.bf16.mxu0 %v673
    %1010 = vmatpush1.bf16.msra.mxu0 %v672
    %1011 = vmatprep.subr.bf16.mxu0 %v665
    %1012 = vmatpush1.bf16.msra.mxu0 %v664
    %1013 = vmatprep.subr.bf16.mxu0 %v657
    %1014 = vmatpush1.bf16.msra.mxu0 %v656
    %1015 = vmatprep.subr.bf16.mxu0 %v649
    %1016 = vmatpush1.bf16.msra.mxu0 %v648
    %1017 = vmatprep.subr.bf16.mxu0 %v641
    %1018 = vmatpush1.bf16.msra.mxu0 %v640
    %1019 = vmatprep.subr.bf16.mxu0 %v633
    %1020 = vmatpush1.bf16.msra.mxu0 %v632
    %1021 = vmatprep.subr.bf16.mxu0 %v753
    %1022 = vmatpush2.bf16.msra.mxu0 %v752
    %1023 = vmatprep.subr.bf16.mxu0 %v745
    %1024 = vmatpush2.bf16.msra.mxu0 %v744
    %1025 = vmatprep.subr.bf16.mxu0 %v737
    %1026 = vmatpush2.bf16.msra.mxu0 %v736
    %1027 = vmatprep.subr.bf16.mxu0 %v729
    %1028 = vmatpush2.bf16.msra.mxu0 %v728
    %1029 = vmatprep.subr.bf16.mxu0 %v721
    %1030 = vmatpush2.bf16.msra.mxu0 %v720
    %1031 = vmatprep.subr.bf16.mxu0 %v713
    %1032 = vmatpush2.bf16.msra.mxu0 %v712
    %1033 = vmatprep.subr.bf16.mxu0 %v705
    %1034 = vmatpush2.bf16.msra.mxu0 %v704
    %1035 = vmatprep.subr.bf16.mxu0 %v697
    %1036 = vmatpush2.bf16.msra.mxu0 %v696
    %1037 = vmatprep.mubr.bf16.mxu0 %v113
    %1038 = vmatmul.mubr.bf16.gmra.mxu0 %v112
    %v1039 = vpop.f32.mrf.mxu0
    %v1040 = vadd.f32 0.0, %v1039
    %v1041 = vpop.f32.mrf.mxu0
    %v1042 = vadd.f32 0.0, %v1041
    %v1043 = vpop.f32.mrf.mxu0
    %v1044 = vpop.f32.mrf.mxu0
    %1045 = vdwg.mxu0
    %v1046 = vmax.f32 %v917, %v958
    %v1047 = vmax.f32 %v919, %v960
    %v1048 = vmax.f32 %v999, %v1040
    %v1049 = vmax.f32 %v1001, %v1042
    %v1050 = vmax.f32 %v1046, %v1048
    %v1051 = vmax.f32 %v1047, %v1049
    %v1052 = vld [vmem:[%s2] sm:$0x3]
    %v1054 = vlaneseq
    %v1055 = vshrl.u32 %v1054, 7
    %v1056 = vsub.s32 0, %v1055
    %v1057 = vrot.slane %v1052, %v1056
    %v1058 = vlaneseq
    %v1059 = vshrl.u32 %v1058, 7
    %v1060 = vsub.s32 1, %v1059
    %v1061 = vrot.slane %v1052, %v1060
    %v1064 = vadd.f32 %v1050, %v1057
    %v1065 = vadd.f32 %v1051, %v1061
    %v1066 = vmax.f32 %v1064, 0.0
    %v1067 = vmax.f32 %v1065, 0.0
    %v1068 = vpack.c.bf16 %v1066, %v1066
    %v1069 = vpack.c.bf16 %v1067, %v1067
    %v1070 = vld [vmem:[#allocation7] sm:$0xff]
    %v1071 = vld [vmem:[#allocation7 + $0x8] sm:$0xff]
    %v1072 = vld [vmem:[#allocation7 + $0x10] sm:$0xff]
    %v1073 = vld [vmem:[#allocation7 + $0x18] sm:$0xff]
    %v1074 = vld [vmem:[#allocation7 + $0x20] sm:$0xff]
    %v1075 = vld [vmem:[#allocation7 + $0x28] sm:$0xff]
    %v1076 = vld [vmem:[#allocation7 + $0x30] sm:$0xff]
    %v1077 = vld [vmem:[#allocation7 + $0x38] sm:$0xff]
    %v1078 = vld [vmem:[#allocation7 + $0x40] sm:$0xff]
    %v1079 = vld [vmem:[#allocation7 + $0x48] sm:$0xff]
    %v1080 = vld [vmem:[#allocation7 + $0x50] sm:$0xff]
    %v1081 = vld [vmem:[#allocation7 + $0x58] sm:$0xff]
    %v1082 = vld [vmem:[#allocation7 + $0x60] sm:$0xff]
    %v1083 = vld [vmem:[#allocation7 + $0x68] sm:$0xff]
    %v1084 = vld [vmem:[#allocation7 + $0x70] sm:$0xff]
    %v1085 = vld [vmem:[#allocation7 + $0x78] sm:$0xff]
    %v1086 = vld [vmem:[#allocation7 + $0x80] sm:$0xff]
    %v1087 = vld [vmem:[#allocation7 + $0x88] sm:$0xff]
    %v1088 = vld [vmem:[#allocation7 + $0x90] sm:$0xff]
    %v1089 = vld [vmem:[#allocation7 + $0x98] sm:$0xff]
    %v1090 = vld [vmem:[#allocation7 + $0xa0] sm:$0xff]
    %v1091 = vld [vmem:[#allocation7 + $0xa8] sm:$0xff]
    %v1092 = vld [vmem:[#allocation7 + $0xb0] sm:$0xff]
    %v1093 = vld [vmem:[#allocation7 + $0xb8] sm:$0xff]
    %v1094 = vld [vmem:[#allocation7 + $0xc0] sm:$0xff]
    %v1095 = vld [vmem:[#allocation7 + $0xc8] sm:$0xff]
    %v1096 = vld [vmem:[#allocation7 + $0xd0] sm:$0xff]
    %v1097 = vld [vmem:[#allocation7 + $0xd8] sm:$0xff]
    %v1098 = vld [vmem:[#allocation7 + $0xe0] sm:$0xff]
    %v1099 = vld [vmem:[#allocation7 + $0xe8] sm:$0xff]
    %v1100 = vld [vmem:[#allocation7 + $0xf0] sm:$0xff]
    %v1101 = vld [vmem:[#allocation7 + $0xf8] sm:$0xff]
    %v1102 = vld [vmem:[#allocation7 + $0x100] sm:$0xff]
    %v1103 = vld [vmem:[#allocation7 + $0x108] sm:$0xff]
    %v1104 = vld [vmem:[#allocation7 + $0x110] sm:$0xff]
    %v1105 = vld [vmem:[#allocation7 + $0x118] sm:$0xff]
    %v1106 = vld [vmem:[#allocation7 + $0x120] sm:$0xff]
    %v1107 = vld [vmem:[#allocation7 + $0x128] sm:$0xff]
    %v1108 = vld [vmem:[#allocation7 + $0x130] sm:$0xff]
    %v1109 = vld [vmem:[#allocation7 + $0x138] sm:$0xff]
    %v1110 = vld [vmem:[#allocation7 + $0x140] sm:$0xff]
    %v1111 = vld [vmem:[#allocation7 + $0x148] sm:$0xff]
    %v1112 = vld [vmem:[#allocation7 + $0x150] sm:$0xff]
    %v1113 = vld [vmem:[#allocation7 + $0x158] sm:$0xff]
    %v1114 = vld [vmem:[#allocation7 + $0x160] sm:$0xff]
    %v1115 = vld [vmem:[#allocation7 + $0x168] sm:$0xff]
    %v1116 = vld [vmem:[#allocation7 + $0x170] sm:$0xff]
    %v1117 = vld [vmem:[#allocation7 + $0x178] sm:$0xff]
    %v1118 = vld [vmem:[#allocation7 + $0x180] sm:$0xff]
    %v1119 = vld [vmem:[#allocation7 + $0x188] sm:$0xff]
    %v1120 = vld [vmem:[#allocation7 + $0x190] sm:$0xff]
    %v1121 = vld [vmem:[#allocation7 + $0x198] sm:$0xff]
    %v1122 = vld [vmem:[#allocation7 + $0x1a0] sm:$0xff]
    %v1123 = vld [vmem:[#allocation7 + $0x1a8] sm:$0xff]
    %v1124 = vld [vmem:[#allocation7 + $0x1b0] sm:$0xff]
    %v1125 = vld [vmem:[#allocation7 + $0x1b8] sm:$0xff]
    %v1126 = vld [vmem:[#allocation7 + $0x1c0] sm:$0xff]
    %v1127 = vld [vmem:[#allocation7 + $0x1c8] sm:$0xff]
    %v1128 = vld [vmem:[#allocation7 + $0x1d0] sm:$0xff]
    %v1129 = vld [vmem:[#allocation7 + $0x1d8] sm:$0xff]
    %v1130 = vld [vmem:[#allocation7 + $0x1e0] sm:$0xff]
    %v1131 = vld [vmem:[#allocation7 + $0x1e8] sm:$0xff]
    %v1132 = vld [vmem:[#allocation7 + $0x1f0] sm:$0xff]
    %v1133 = vld [vmem:[#allocation7 + $0x1f8] sm:$0xff]
    %v1198 = vunpack.c.l.b16 %v1070
    %v1199 = vunpack.c.h.b16 %v1070
    %v1200 = vunpack.c.l.b16 %v1071
    %v1201 = vunpack.c.h.b16 %v1071
    %v1202 = vunpack.c.l.b16 %v1072
    %v1203 = vunpack.c.h.b16 %v1072
    %v1204 = vunpack.c.l.b16 %v1073
    %v1205 = vunpack.c.h.b16 %v1073
    %v1206 = vunpack.c.l.b16 %v1074
    %v1207 = vunpack.c.h.b16 %v1074
    %v1208 = vunpack.c.l.b16 %v1075
    %v1209 = vunpack.c.h.b16 %v1075
    %v1210 = vunpack.c.l.b16 %v1076
    %v1211 = vunpack.c.h.b16 %v1076
    %v1212 = vunpack.c.l.b16 %v1077
    %v1213 = vunpack.c.h.b16 %v1077
    %v1214 = vunpack.c.l.b16 %v1078
    %v1215 = vunpack.c.h.b16 %v1078
    %v1216 = vunpack.c.l.b16 %v1079
    %v1217 = vunpack.c.h.b16 %v1079
    %v1218 = vunpack.c.l.b16 %v1080
    %v1219 = vunpack.c.h.b16 %v1080
    %v1220 = vunpack.c.l.b16 %v1081
    %v1221 = vunpack.c.h.b16 %v1081
    %v1222 = vunpack.c.l.b16 %v1082
    %v1223 = vunpack.c.h.b16 %v1082
    %v1224 = vunpack.c.l.b16 %v1083
    %v1225 = vunpack.c.h.b16 %v1083
    %v1226 = vunpack.c.l.b16 %v1084
    %v1227 = vunpack.c.h.b16 %v1084
    %v1228 = vunpack.c.l.b16 %v1085
    %v1229 = vunpack.c.h.b16 %v1085
    %v1230 = vunpack.c.l.b16 %v1086
    %v1231 = vunpack.c.h.b16 %v1086
    %v1232 = vunpack.c.l.b16 %v1087
    %v1233 = vunpack.c.h.b16 %v1087
    %v1234 = vunpack.c.l.b16 %v1088
    %v1235 = vunpack.c.h.b16 %v1088
    %v1236 = vunpack.c.l.b16 %v1089
    %v1237 = vunpack.c.h.b16 %v1089
    %v1238 = vunpack.c.l.b16 %v1090
    %v1239 = vunpack.c.h.b16 %v1090
    %v1240 = vunpack.c.l.b16 %v1091
    %v1241 = vunpack.c.h.b16 %v1091
    %v1242 = vunpack.c.l.b16 %v1092
    %v1243 = vunpack.c.h.b16 %v1092
    %v1244 = vunpack.c.l.b16 %v1093
    %v1245 = vunpack.c.h.b16 %v1093
    %v1246 = vunpack.c.l.b16 %v1094
    %v1247 = vunpack.c.h.b16 %v1094
    %v1248 = vunpack.c.l.b16 %v1095
    %v1249 = vunpack.c.h.b16 %v1095
    %v1250 = vunpack.c.l.b16 %v1096
    %v1251 = vunpack.c.h.b16 %v1096
    %v1252 = vunpack.c.l.b16 %v1097
    %v1253 = vunpack.c.h.b16 %v1097
    %v1254 = vunpack.c.l.b16 %v1098
    %v1255 = vunpack.c.h.b16 %v1098
    %v1256 = vunpack.c.l.b16 %v1099
    %v1257 = vunpack.c.h.b16 %v1099
    %v1258 = vunpack.c.l.b16 %v1100
    %v1259 = vunpack.c.h.b16 %v1100
    %v1260 = vunpack.c.l.b16 %v1101
    %v1261 = vunpack.c.h.b16 %v1101
    %v1262 = vunpack.c.l.b16 %v1102
    %v1263 = vunpack.c.h.b16 %v1102
    %v1264 = vunpack.c.l.b16 %v1103
    %v1265 = vunpack.c.h.b16 %v1103
    %v1266 = vunpack.c.l.b16 %v1104
    %v1267 = vunpack.c.h.b16 %v1104
    %v1268 = vunpack.c.l.b16 %v1105
    %v1269 = vunpack.c.h.b16 %v1105
    %v1270 = vunpack.c.l.b16 %v1106
    %v1271 = vunpack.c.h.b16 %v1106
    %v1272 = vunpack.c.l.b16 %v1107
    %v1273 = vunpack.c.h.b16 %v1107
    %v1274 = vunpack.c.l.b16 %v1108
    %v1275 = vunpack.c.h.b16 %v1108
    %v1276 = vunpack.c.l.b16 %v1109
    %v1277 = vunpack.c.h.b16 %v1109
    %v1278 = vunpack.c.l.b16 %v1110
    %v1279 = vunpack.c.h.b16 %v1110
    %v1280 = vunpack.c.l.b16 %v1111
    %v1281 = vunpack.c.h.b16 %v1111
    %v1282 = vunpack.c.l.b16 %v1112
    %v1283 = vunpack.c.h.b16 %v1112
    %v1284 = vunpack.c.l.b16 %v1113
    %v1285 = vunpack.c.h.b16 %v1113
    %v1286 = vunpack.c.l.b16 %v1114
    %v1287 = vunpack.c.h.b16 %v1114
    %v1288 = vunpack.c.l.b16 %v1115
    %v1289 = vunpack.c.h.b16 %v1115
    %v1290 = vunpack.c.l.b16 %v1116
    %v1291 = vunpack.c.h.b16 %v1116
    %v1292 = vunpack.c.l.b16 %v1117
    %v1293 = vunpack.c.h.b16 %v1117
    %v1294 = vunpack.c.l.b16 %v1118
    %v1295 = vunpack.c.h.b16 %v1118
    %v1296 = vunpack.c.l.b16 %v1119
    %v1297 = vunpack.c.h.b16 %v1119
    %v1298 = vunpack.c.l.b16 %v1120
    %v1299 = vunpack.c.h.b16 %v1120
    %v1300 = vunpack.c.l.b16 %v1121
    %v1301 = vunpack.c.h.b16 %v1121
    %v1302 = vunpack.c.l.b16 %v1122
    %v1303 = vunpack.c.h.b16 %v1122
    %v1304 = vunpack.c.l.b16 %v1123
    %v1305 = vunpack.c.h.b16 %v1123
    %v1306 = vunpack.c.l.b16 %v1124
    %v1307 = vunpack.c.h.b16 %v1124
    %v1308 = vunpack.c.l.b16 %v1125
    %v1309 = vunpack.c.h.b16 %v1125
    %v1310 = vunpack.c.l.b16 %v1126
    %v1311 = vunpack.c.h.b16 %v1126
    %v1312 = vunpack.c.l.b16 %v1127
    %v1313 = vunpack.c.h.b16 %v1127
    %v1314 = vunpack.c.l.b16 %v1128
    %v1315 = vunpack.c.h.b16 %v1128
    %v1316 = vunpack.c.l.b16 %v1129
    %v1317 = vunpack.c.h.b16 %v1129
    %v1318 = vunpack.c.l.b16 %v1130
    %v1319 = vunpack.c.h.b16 %v1130
    %v1320 = vunpack.c.l.b16 %v1131
    %v1321 = vunpack.c.h.b16 %v1131
    %v1322 = vunpack.c.l.b16 %v1132
    %v1323 = vunpack.c.h.b16 %v1132
    %v1324 = vunpack.c.l.b16 %v1133
    %v1325 = vunpack.c.h.b16 %v1133
    %v1326 = vpack.c.b16 %v1202, %v1198
    %v1327 = vpack.c.b16 %v1203, %v1199
    %v1328 = vpack.c.b16 %v1204, %v1200
    %v1329 = vpack.c.b16 %v1205, %v1201
    %v1330 = vpack.c.b16 %v1210, %v1206
    %v1331 = vpack.c.b16 %v1211, %v1207
    %v1332 = vpack.c.b16 %v1212, %v1208
    %v1333 = vpack.c.b16 %v1213, %v1209
    %v1334 = vpack.c.b16 %v1218, %v1214
    %v1335 = vpack.c.b16 %v1219, %v1215
    %v1336 = vpack.c.b16 %v1220, %v1216
    %v1337 = vpack.c.b16 %v1221, %v1217
    %v1338 = vpack.c.b16 %v1226, %v1222
    %v1339 = vpack.c.b16 %v1227, %v1223
    %v1340 = vpack.c.b16 %v1228, %v1224
    %v1341 = vpack.c.b16 %v1229, %v1225
    %v1342 = vpack.c.b16 %v1234, %v1230
    %v1343 = vpack.c.b16 %v1235, %v1231
    %v1344 = vpack.c.b16 %v1236, %v1232
    %v1345 = vpack.c.b16 %v1237, %v1233
    %v1346 = vpack.c.b16 %v1242, %v1238
    %v1347 = vpack.c.b16 %v1243, %v1239
    %v1348 = vpack.c.b16 %v1244, %v1240
    %v1349 = vpack.c.b16 %v1245, %v1241
    %v1350 = vpack.c.b16 %v1250, %v1246
    %v1351 = vpack.c.b16 %v1251, %v1247
    %v1352 = vpack.c.b16 %v1252, %v1248
    %v1353 = vpack.c.b16 %v1253, %v1249
    %v1354 = vpack.c.b16 %v1258, %v1254
    %v1355 = vpack.c.b16 %v1259, %v1255
    %v1356 = vpack.c.b16 %v1260, %v1256
    %v1357 = vpack.c.b16 %v1261, %v1257
    %v1358 = vpack.c.b16 %v1266, %v1262
    %v1359 = vpack.c.b16 %v1267, %v1263
    %v1360 = vpack.c.b16 %v1268, %v1264
    %v1361 = vpack.c.b16 %v1269, %v1265
    %v1362 = vpack.c.b16 %v1274, %v1270
    %v1363 = vpack.c.b16 %v1275, %v1271
    %v1364 = vpack.c.b16 %v1276, %v1272
    %v1365 = vpack.c.b16 %v1277, %v1273
    %v1366 = vpack.c.b16 %v1282, %v1278
    %v1367 = vpack.c.b16 %v1283, %v1279
    %v1368 = vpack.c.b16 %v1284, %v1280
    %v1369 = vpack.c.b16 %v1285, %v1281
    %v1370 = vpack.c.b16 %v1290, %v1286
    %v1371 = vpack.c.b16 %v1291, %v1287
    %v1372 = vpack.c.b16 %v1292, %v1288
    %v1373 = vpack.c.b16 %v1293, %v1289
    %v1374 = vpack.c.b16 %v1298, %v1294
    %v1375 = vpack.c.b16 %v1299, %v1295
    %v1376 = vpack.c.b16 %v1300, %v1296
    %v1377 = vpack.c.b16 %v1301, %v1297
    %v1378 = vpack.c.b16 %v1306, %v1302
    %v1379 = vpack.c.b16 %v1307, %v1303
    %v1380 = vpack.c.b16 %v1308, %v1304
    %v1381 = vpack.c.b16 %v1309, %v1305
    %v1382 = vpack.c.b16 %v1314, %v1310
    %v1383 = vpack.c.b16 %v1315, %v1311
    %v1384 = vpack.c.b16 %v1316, %v1312
    %v1385 = vpack.c.b16 %v1317, %v1313
    %v1386 = vpack.c.b16 %v1322, %v1318
    %v1387 = vpack.c.b16 %v1323, %v1319
    %v1388 = vpack.c.b16 %v1324, %v1320
    %v1389 = vpack.c.b16 %v1325, %v1321
    %1454 = vmatprep.subr.bf16.mxu0 %v1355
    %1455 = vmatpush1.bf16.msra.mxu0 %v1354
    %1456 = vmatprep.subr.bf16.mxu0 %v1351
    %1457 = vmatpush1.bf16.msra.mxu0 %v1350
    %1458 = vmatprep.subr.bf16.mxu0 %v1347
    %1459 = vmatpush1.bf16.msra.mxu0 %v1346
    %1460 = vmatprep.subr.bf16.mxu0 %v1343
    %1461 = vmatpush1.bf16.msra.mxu0 %v1342
    %1462 = vmatprep.subr.bf16.mxu0 %v1339
    %1463 = vmatpush1.bf16.msra.mxu0 %v1338
    %1464 = vmatprep.subr.bf16.mxu0 %v1335
    %1465 = vmatpush1.bf16.msra.mxu0 %v1334
    %1466 = vmatprep.subr.bf16.mxu0 %v1331
    %1467 = vmatpush1.bf16.msra.mxu0 %v1330
    %1468 = vmatprep.subr.bf16.mxu0 %v1327
    %1469 = vmatpush1.bf16.msra.mxu0 %v1326
    %1470 = vmatprep.subr.bf16.mxu0 %v1387
    %1471 = vmatpush2.bf16.msra.mxu0 %v1386
    %1472 = vmatprep.subr.bf16.mxu0 %v1383
    %1473 = vmatpush2.bf16.msra.mxu0 %v1382
    %1474 = vmatprep.subr.bf16.mxu0 %v1379
    %1475 = vmatpush2.bf16.msra.mxu0 %v1378
    %1476 = vmatprep.subr.bf16.mxu0 %v1375
    %1477 = vmatpush2.bf16.msra.mxu0 %v1374
    %1478 = vmatprep.subr.bf16.mxu0 %v1371
    %1479 = vmatpush2.bf16.msra.mxu0 %v1370
    %1480 = vmatprep.subr.bf16.mxu0 %v1367
    %1481 = vmatpush2.bf16.msra.mxu0 %v1366
    %1482 = vmatprep.subr.bf16.mxu0 %v1363
    %1483 = vmatpush2.bf16.msra.mxu0 %v1362
    %1484 = vmatprep.subr.bf16.mxu0 %v1359
    %1485 = vmatpush2.bf16.msra.mxu0 %v1358
    %1486 = vmatprep.mubr.bf16.mxu0 %v1069
    %1487 = vmatmul.mubr.bf16.gmra.mxu0 %v1068
    %v1488 = vpop.f32.mrf.mxu0
    %v1489 = vadd.f32 0.0, %v1488
    %v1490 = vpop.f32.mrf.mxu0
    %v1491 = vadd.f32 0.0, %v1490
    %v1492 = vpop.f32.mrf.mxu0
    %v1493 = vpop.f32.mrf.mxu0
    %1494 = vdwg.mxu0
    %1495 = vmatprep.subr.bf16.mxu0 %v1357
    %1496 = vmatpush1.bf16.msra.mxu0 %v1356
    %1497 = vmatprep.subr.bf16.mxu0 %v1353
    %1498 = vmatpush1.bf16.msra.mxu0 %v1352
    %1499 = vmatprep.subr.bf16.mxu0 %v1349
    %1500 = vmatpush1.bf16.msra.mxu0 %v1348
    %1501 = vmatprep.subr.bf16.mxu0 %v1345
    %1502 = vmatpush1.bf16.msra.mxu0 %v1344
    %1503 = vmatprep.subr.bf16.mxu0 %v1341
    %1504 = vmatpush1.bf16.msra.mxu0 %v1340
    %1505 = vmatprep.subr.bf16.mxu0 %v1337
    %1506 = vmatpush1.bf16.msra.mxu0 %v1336
    %1507 = vmatprep.subr.bf16.mxu0 %v1333
    %1508 = vmatpush1.bf16.msra.mxu0 %v1332
    %1509 = vmatprep.subr.bf16.mxu0 %v1329
    %1510 = vmatpush1.bf16.msra.mxu0 %v1328
    %1511 = vmatprep.subr.bf16.mxu0 %v1389
    %1512 = vmatpush2.bf16.msra.mxu0 %v1388
    %1513 = vmatprep.subr.bf16.mxu0 %v1385
    %1514 = vmatpush2.bf16.msra.mxu0 %v1384
    %1515 = vmatprep.subr.bf16.mxu0 %v1381
    %1516 = vmatpush2.bf16.msra.mxu0 %v1380
    %1517 = vmatprep.subr.bf16.mxu0 %v1377
    %1518 = vmatpush2.bf16.msra.mxu0 %v1376
    %1519 = vmatprep.subr.bf16.mxu0 %v1373
    %1520 = vmatpush2.bf16.msra.mxu0 %v1372
    %1521 = vmatprep.subr.bf16.mxu0 %v1369
    %1522 = vmatpush2.bf16.msra.mxu0 %v1368
    %1523 = vmatprep.subr.bf16.mxu0 %v1365
    %1524 = vmatpush2.bf16.msra.mxu0 %v1364
    %1525 = vmatprep.subr.bf16.mxu0 %v1361
    %1526 = vmatpush2.bf16.msra.mxu0 %v1360
    %1527 = vmatprep.mubr.bf16.mxu0 %v1069
    %1528 = vmatmul.mubr.bf16.gmra.mxu0 %v1068
    %v1529 = vpop.f32.mrf.mxu0
    %v1530 = vadd.f32 0.0, %v1529
    %v1531 = vpop.f32.mrf.mxu0
    %v1532 = vadd.f32 0.0, %v1531
    %v1533 = vpop.f32.mrf.mxu0
    %v1534 = vpop.f32.mrf.mxu0
    %1535 = vdwg.mxu0
    %v1536 = vmax.f32 %v1489, %v1491
    %v1537 = vmax.f32 %v1530, %v1532
    %v1538 = vmax.f32 %v1536, %v1537
    %v1539 = vld [vmem:[%s4] sm:$0x1]
    %v1541 = vlaneseq
    %v1542 = vshrl.u32 %v1541, 7
    %v1543 = vsub.s32 0, %v1542
    %v1544 = vrot.slane %v1539, %v1543
    %v1546 = vadd.f32 %v1538, %v1544
    %v1547 = vmax.f32 %v1546, 0.0
    %v1548 = vpack.c.bf16 %v1547, %v1547
    %v1549 = vld [vmem:[#allocation8] sm:$0xf]
    %v1550 = vld [vmem:[#allocation8 + $0x4] sm:$0xf]
    %v1551 = vld [vmem:[#allocation8 + $0x8] sm:$0xf]
    %v1552 = vld [vmem:[#allocation8 + $0xc] sm:$0xf]
    %v1553 = vld [vmem:[#allocation8 + $0x10] sm:$0xf]
    %v1554 = vld [vmem:[#allocation8 + $0x14] sm:$0xf]
    %v1555 = vld [vmem:[#allocation8 + $0x18] sm:$0xf]
    %v1556 = vld [vmem:[#allocation8 + $0x1c] sm:$0xf]
    %v1557 = vld [vmem:[#allocation8 + $0x20] sm:$0xf]
    %v1558 = vld [vmem:[#allocation8 + $0x24] sm:$0xf]
    %v1559 = vld [vmem:[#allocation8 + $0x28] sm:$0xf]
    %v1560 = vld [vmem:[#allocation8 + $0x2c] sm:$0xf]
    %v1561 = vld [vmem:[#allocation8 + $0x30] sm:$0xf]
    %v1562 = vld [vmem:[#allocation8 + $0x34] sm:$0xf]
    %v1563 = vld [vmem:[#allocation8 + $0x38] sm:$0xf]
    %v1564 = vld [vmem:[#allocation8 + $0x3c] sm:$0xf]
    %v1565 = vld [vmem:[%s6] sm:$0x1]
    %v1567 = vlaneseq
    %v1568 = vshrl.u32 %v1567, 7
    %v1569 = vsub.s32 0, %v1568
    %v1570 = vrot.slane %v1565, %v1569
    %v1588 = vunpack.c.l.b16 %v1549
    %v1589 = vunpack.c.l.b16 %v1550
    %v1590 = vunpack.c.l.b16 %v1551
    %v1591 = vunpack.c.l.b16 %v1552
    %v1592 = vunpack.c.l.b16 %v1553
    %v1593 = vunpack.c.l.b16 %v1554
    %v1594 = vunpack.c.l.b16 %v1555
    %v1595 = vunpack.c.l.b16 %v1556
    %v1596 = vunpack.c.l.b16 %v1557
    %v1597 = vunpack.c.l.b16 %v1558
    %v1598 = vunpack.c.l.b16 %v1559
    %v1599 = vunpack.c.l.b16 %v1560
    %v1600 = vunpack.c.l.b16 %v1561
    %v1601 = vunpack.c.l.b16 %v1562
    %v1602 = vunpack.c.l.b16 %v1563
    %v1603 = vunpack.c.l.b16 %v1564
    %v1604 = vpack.c.b16 %v1589, %v1588
    %v1605 = vpack.c.b16 %v1591, %v1590
    %v1606 = vpack.c.b16 %v1593, %v1592
    %v1607 = vpack.c.b16 %v1595, %v1594
    %v1608 = vpack.c.b16 %v1597, %v1596
    %v1609 = vpack.c.b16 %v1599, %v1598
    %v1610 = vpack.c.b16 %v1601, %v1600
    %v1611 = vpack.c.b16 %v1603, %v1602
    %1620 = vmatprep.subr.bf16.mxu0 0
    %1621 = vmatpush1.bf16.msra.mxu0 %v1611
    %1622 = vmatprep.subr.bf16.mxu0 0
    %1623 = vmatpush1.bf16.msra.mxu0 %v1610
    %1624 = vmatprep.subr.bf16.mxu0 0
    %1625 = vmatpush1.bf16.msra.mxu0 %v1609
    %1626 = vmatprep.subr.bf16.mxu0 0
    %1627 = vmatpush1.bf16.msra.mxu0 %v1608
    %1628 = vmatprep.subr.bf16.mxu0 0
    %1629 = vmatpush1.bf16.msra.mxu0 %v1607
    %1630 = vmatprep.subr.bf16.mxu0 0
    %1631 = vmatpush1.bf16.msra.mxu0 %v1606
    %1632 = vmatprep.subr.bf16.mxu0 0
    %1633 = vmatpush1.bf16.msra.mxu0 %v1605
    %1634 = vmatprep.subr.bf16.mxu0 0
    %1635 = vmatpush1.bf16.msra.mxu0 %v1604
    %1636 = vmatprep.subr.bf16.mxu0 0
    %1637 = vmatpush2.bf16.msra.mxu0 0
    %1638 = vmatprep.subr.bf16.mxu0 0
    %1639 = vmatpush2.bf16.msra.mxu0 0
    %1640 = vmatprep.subr.bf16.mxu0 0
    %1641 = vmatpush2.bf16.msra.mxu0 0
    %1642 = vmatprep.subr.bf16.mxu0 0
    %1643 = vmatpush2.bf16.msra.mxu0 0
    %1644 = vmatprep.subr.bf16.mxu0 0
    %1645 = vmatpush2.bf16.msra.mxu0 0
    %1646 = vmatprep.subr.bf16.mxu0 0
    %1647 = vmatpush2.bf16.msra.mxu0 0
    %1648 = vmatprep.subr.bf16.mxu0 0
    %1649 = vmatpush2.bf16.msra.mxu0 0
    %1650 = vmatprep.subr.bf16.mxu0 0
    %1651 = vmatpush2.bf16.msra.mxu0 0
    %1652 = vmatprep.mubr.bf16.mxu0 0
    %1653 = vmatmul.mubr.bf16.gmra.mxu0 %v1548
    %v1654 = vpop.f32.mrf.mxu0
    %v1655 = vadd.f32 %v1570, %v1654
    %v1656 = vpop.f32.mrf.mxu0
    %v1657 = vpop.f32.mrf.mxu0
    %v1658 = vpop.f32.mrf.mxu0
    %1659 = vdwg.mxu0
    %v1660 = vmax.f32 %v1655, 0.0
    %v1661 = vpack.c.bf16 %v1660, %v1660
    %v1662 = vld [vmem:[#allocation10] sm:$0xf]
    %v1663 = vld [vmem:[#allocation10 + $0x4] sm:$0xf]
    %v1664 = vld [vmem:[#allocation10 + $0x8] sm:$0xf]
    %v1665 = vld [vmem:[#allocation10 + $0xc] sm:$0xf]
    %v1666 = vld [vmem:[#allocation10 + $0x10] sm:$0xf]
    %v1667 = vld [vmem:[#allocation10 + $0x14] sm:$0xf]
    %v1668 = vld [vmem:[#allocation10 + $0x18] sm:$0xf]
    %v1669 = vld [vmem:[#allocation10 + $0x1c] sm:$0xf]
    %v1670 = vld [vmem:[#allocation10 + $0x20] sm:$0xf]
    %v1671 = vld [vmem:[#allocation10 + $0x24] sm:$0xf]
    %v1672 = vld [vmem:[#allocation10 + $0x28] sm:$0xf]
    %v1673 = vld [vmem:[#allocation10 + $0x2c] sm:$0xf]
    %v1674 = vld [vmem:[#allocation10 + $0x30] sm:$0xf]
    %v1675 = vld [vmem:[#allocation10 + $0x34] sm:$0xf]
    %v1676 = vld [vmem:[#allocation10 + $0x38] sm:$0xf]
    %v1677 = vld [vmem:[#allocation10 + $0x3c] sm:$0xf]
    %v1678 = vld [vmem:[%s8] sm:$0x1]
    %v1680 = vlaneseq
    %v1681 = vshrl.u32 %v1680, 7
    %v1682 = vsub.s32 0, %v1681
    %v1683 = vrot.slane %v1678, %v1682
    %v1701 = vunpack.c.l.b16 %v1662
    %v1702 = vunpack.c.l.b16 %v1663
    %v1703 = vunpack.c.l.b16 %v1664
    %v1704 = vunpack.c.l.b16 %v1665
    %v1705 = vunpack.c.l.b16 %v1666
    %v1706 = vunpack.c.l.b16 %v1667
    %v1707 = vunpack.c.l.b16 %v1668
    %v1708 = vunpack.c.l.b16 %v1669
    %v1709 = vunpack.c.l.b16 %v1670
    %v1710 = vunpack.c.l.b16 %v1671
    %v1711 = vunpack.c.l.b16 %v1672
    %v1712 = vunpack.c.l.b16 %v1673
    %v1713 = vunpack.c.l.b16 %v1674
    %v1714 = vunpack.c.l.b16 %v1675
    %v1715 = vunpack.c.l.b16 %v1676
    %v1716 = vunpack.c.l.b16 %v1677
    %v1717 = vpack.c.b16 %v1702, %v1701
    %v1718 = vpack.c.b16 %v1704, %v1703
    %v1719 = vpack.c.b16 %v1706, %v1705
    %v1720 = vpack.c.b16 %v1708, %v1707
    %v1721 = vpack.c.b16 %v1710, %v1709
    %v1722 = vpack.c.b16 %v1712, %v1711
    %v1723 = vpack.c.b16 %v1714, %v1713
    %v1724 = vpack.c.b16 %v1716, %v1715
    %1733 = vmatprep.subr.bf16.mxu0 0
    %1734 = vmatpush1.bf16.msra.mxu0 %v1724
    %1735 = vmatprep.subr.bf16.mxu0 0
    %1736 = vmatpush1.bf16.msra.mxu0 %v1723
    %1737 = vmatprep.subr.bf16.mxu0 0
    %1738 = vmatpush1.bf16.msra.mxu0 %v1722
    %1739 = vmatprep.subr.bf16.mxu0 0
    %1740 = vmatpush1.bf16.msra.mxu0 %v1721
    %1741 = vmatprep.subr.bf16.mxu0 0
    %1742 = vmatpush1.bf16.msra.mxu0 %v1720
    %1743 = vmatprep.subr.bf16.mxu0 0
    %1744 = vmatpush1.bf16.msra.mxu0 %v1719
    %1745 = vmatprep.subr.bf16.mxu0 0
    %1746 = vmatpush1.bf16.msra.mxu0 %v1718
    %1747 = vmatprep.subr.bf16.mxu0 0
    %1748 = vmatpush1.bf16.msra.mxu0 %v1717
    %1749 = vmatprep.subr.bf16.mxu0 0
    %1750 = vmatpush2.bf16.msra.mxu0 0
    %1751 = vmatprep.subr.bf16.mxu0 0
    %1752 = vmatpush2.bf16.msra.mxu0 0
    %1753 = vmatprep.subr.bf16.mxu0 0
    %1754 = vmatpush2.bf16.msra.mxu0 0
    %1755 = vmatprep.subr.bf16.mxu0 0
    %1756 = vmatpush2.bf16.msra.mxu0 0
    %1757 = vmatprep.subr.bf16.mxu0 0
    %1758 = vmatpush2.bf16.msra.mxu0 0
    %1759 = vmatprep.subr.bf16.mxu0 0
    %1760 = vmatpush2.bf16.msra.mxu0 0
    %1761 = vmatprep.subr.bf16.mxu0 0
    %1762 = vmatpush2.bf16.msra.mxu0 0
    %1763 = vmatprep.subr.bf16.mxu0 0
    %1764 = vmatpush2.bf16.msra.mxu0 0
    %1765 = vmatprep.mubr.bf16.mxu0 0
    %1766 = vmatmul.mubr.bf16.gmra.mxu0 %v1661
    %v1767 = vpop.f32.mrf.mxu0
    %v1768 = vadd.f32 %v1683, %v1767
    %v1769 = vpop.f32.mrf.mxu0
    %v1770 = vpop.f32.mrf.mxu0
    %v1771 = vpop.f32.mrf.mxu0
    %1772 = vdwg.mxu0
    %vm1773 = vcmask 1041408
    %v1774 = vsel %vm1773, %v1768, -inf
    %1775 = vmax.xlane.f32.xlu0 %v1774
    %v1776 = vpop.xlane.xlu0 %1775
    %v1777 = vsub.f32 %v1768, %v1776
    %v1778 = vmul.f32 %v1777, 1.442695
    %v1779 = vpow.pop %v1778
    %v1780 = vsel %vm1773, %v1779, 0.0
    %1781 = vadd.xlane.f32.xlu0 %v1780
    %v1782 = vpop.xlane.xlu0 %1781
    %v1783 = vlog2.pop %v1782
    %v1784 = vmul.f32 %v1783, 0.6931472
    %v1785 = vsub.f32 %v1777, %v1784
    %1786 = vst [vmem:[#allocation11] sm:$0x3] %v1785
    // Predicated region
    $region58: #{tpu_custom_call.1} parent=1 // pred_check
      _
    $region59: #{tpu_custom_call.1} parent=1 // pred_check_branch
      %1788 = sbr.rel (0) target = $region61
    $region60: #{tpu_custom_call.1} parent=1 // pred_region
      %s1790 = ssub.s32 32, 32
      %1791 = vsyncadd [#allocation4], %s1790
      %s1793 = sshll.u32 [#allocation11], 4
      %s1794 = int_to_ptr.vmem [resolvable:$true] %s1793
      %1796 = dma.vmem_to_hbm [thread:$0]  %s1794, 32, %s9, [#allocation4]
    $region61: #{tpu_custom_call.1} parent=1 // pred_fallthru
      _
    // Predicated region
    $region62: #{tpu_custom_call.1} parent=1 // pred_check
      _
    $region63: #{tpu_custom_call.1} parent=1 // pred_check_branch
      %1798 = sbr.rel (0) target = $region65
    $region64: #{tpu_custom_call.1} parent=1 // pred_region
      %1799 = dma.done [#allocation4], 32
    $region65: #{tpu_custom_call.1} parent=1 // pred_fallthru
      _
    %1800 = vsyncpa [#allocation3], 1
    %1801 = vsyncpa [#allocation6], 1
    %1802 = vsyncpa [#allocation9], 1
    %1803 = vsyncpa [#allocation4], 1

</llo_original>
